<compile_context>
chip_gen: v7x
topology: tpu7x:2x2x1
jax: 0.10.0
libtpu: 0.0.40
codegen_flags: <defaults>
</compile_context>

<pallas_src>
import functools

import jax
import jax.numpy as jnp
from jax.experimental import pallas as pl
from jax.experimental.pallas import tpu as pltpu


def deepfm_kernel(flat_ref, fm1_ref, a_ref,
                  w1_ref, b1_ref, w2_ref, b2_ref, w3_ref, b3_ref, w4_ref,
                  out_ref, *, inv_two_e):
    flat = flat_ref[...]                                        # (TB, D) f32

    # ---- FM second-order term via one small f32 MXU matmul ----
    # (flat @ A)[b, f*E+e] = sum_{f'!=f} x[b, f', e]  =>  sum_D flat * (flat@A)
    #   = sum_e ( (sum_f x)^2 - sum_f x^2 )  == (sum_square - square_sum) summed over E.
    mixed = jnp.dot(flat, a_ref[...], preferred_element_type=jnp.float32)   # (TB, D)
    fm2 = jnp.sum(flat * mixed, axis=1, keepdims=True) * inv_two_e          # (TB, 1)

    # ---- DNN tower: 3x (Linear + ReLU) on the MXU, fc4 as a VPU reduce ----
    mdt = w1_ref.dtype                                          # bf16 (or f32)
    h = jnp.dot(flat.astype(mdt), w1_ref[...], preferred_element_type=jnp.float32)
    h = jnp.maximum(h + b1_ref[...], 0.0)
    h = jnp.dot(h.astype(mdt), w2_ref[...], preferred_element_type=jnp.float32)
    h = jnp.maximum(h + b2_ref[...], 0.0)
    h = jnp.dot(h.astype(mdt), w3_ref[...], preferred_element_type=jnp.float32)
    h = jnp.maximum(h + b3_ref[...], 0.0)
    dnn = jnp.sum(h * w4_ref[...], axis=1, keepdims=True)       # fc4 row (1,H) -> (TB,1)

    # fm1 already carries: first-order bias term + global bias + fc4 bias.
    out_ref[...] = fm1_ref[...] + fm2 + dnn                     # (TB, 1)


def deepfm_forward(params, input_embeddings, feature_ids, feature_vals,
                   *, tile_b=256, matmul_dtype=jnp.bfloat16):
    B, F, E = input_embeddings.shape
    D = F * E
    H = params["w1"].shape[1]

    # TODO(synk): the nn.Embedding feature-bias gather is data-dependent, so it stays
    # as JAX indexing in the wrapper rather than inside the kernel.
    biasvals = params["feature_biases"][feature_ids][..., 0] * feature_vals   # (B, F)
    fm1 = jnp.sum(biasvals, axis=1) + params["bias"][0] + params["b4"][0, 0]  # (B,)

    flat = input_embeddings.reshape(B, D).astype(jnp.float32)

    # Batch tiling: single full block for small B, otherwise 128-multiple tiles
    # (B padded up so every block is full; padded rows are sliced off at the end).
    if B <= tile_b:
        tb, Bp = B, B
    else:
        assert tile_b % 128 == 0, "tiled batch blocks must be a multiple of 128"
        tb = tile_b
        Bp = pl.cdiv(B, tb) * tb
        if Bp != B:
            flat = jnp.pad(flat, ((0, Bp - B), (0, 0)))
            fm1 = jnp.pad(fm1, (0, Bp - B))
    fm1 = fm1.reshape(Bp, 1).astype(jnp.float32)

    # FM mixing matrix A = tile(I_E, (F, F)) - I_D  (entries are exactly 0/1/0).
    idx = jnp.arange(D)
    a_mat = ((idx[:, None] % E) == (idx[None, :] % E)).astype(jnp.float32) \
        - jnp.eye(D, dtype=jnp.float32)

    # Weights: bf16 operands for the MXU (f32 accumulation inside the kernel),
    # biases and the fc4 row stay f32 (added post-accumulation / VPU reduce).
    w1 = params["w1"].astype(matmul_dtype)
    w2 = params["w2"].astype(matmul_dtype)
    w3 = params["w3"].astype(matmul_dtype)
    b1 = params["b1"].astype(jnp.float32)
    b2 = params["b2"].astype(jnp.float32)
    b3 = params["b3"].astype(jnp.float32)
    w4 = params["w4"].reshape(1, H).astype(jnp.float32)         # fc4 weight as a row

    # NOTE: for much larger hidden_size / input_dim, add a K/N grid axis
    # ("arbitrary") with a VMEM accumulator instead of full-weight resident blocks.
    grid = (Bp // tb,)
    kernel = functools.partial(deepfm_kernel, inv_two_e=0.5 / E)

    out = pl.pallas_call(
        kernel,
        out_shape=jax.ShapeDtypeStruct((Bp, 1), jnp.float32),
        grid=grid,
        in_specs=[
            pl.BlockSpec((tb, D), lambda i: (i, 0)),            # activations: advance per block
            pl.BlockSpec((tb, 1), lambda i: (i, 0)),            # folded first-order term
            pl.BlockSpec((D, D), lambda i: (0, 0)),             # FM mixing matrix: resident
            pl.BlockSpec((D, H), lambda i: (0, 0)),             # weights: constant -> resident
            pl.BlockSpec((1, H), lambda i: (0, 0)),
            pl.BlockSpec((H, H), lambda i: (0, 0)),
            pl.BlockSpec((1, H), lambda i: (0, 0)),
            pl.BlockSpec((H, H), lambda i: (0, 0)),
            pl.BlockSpec((1, H), lambda i: (0, 0)),
            pl.BlockSpec((1, H), lambda i: (0, 0)),             # fc4 row
        ],
        out_specs=pl.BlockSpec((tb, 1), lambda i: (i, 0)),
        compiler_params=pltpu.CompilerParams(
            dimension_semantics=("parallel",)),
    )(flat, fm1, a_mat, w1, b1, w2, b2, w3, b3, w4)

    return out[:B, 0]                                           # (B,) like PyTorch .squeeze()


def init_params(key, input_dim, num_features, hidden_size):
    ks = jax.random.split(key, 6)
    feature_biases = jax.random.normal(ks[0], (num_features, 1), jnp.float32) * 0.1
    return {
        "feature_biases": feature_biases,
        "bias": jnp.zeros((1,), jnp.float32),
        # Linear weights stored pre-transposed as (in, out); biases as (1, out).
        "w1": jax.random.normal(ks[1], (input_dim, hidden_size), jnp.float32) * 0.05,
        "b1": jnp.zeros((1, hidden_size), jnp.float32),
        "w2": jax.random.normal(ks[2], (hidden_size, hidden_size), jnp.float32) * 0.05,
        "b2": jnp.zeros((1, hidden_size), jnp.float32),
        "w3": jax.random.normal(ks[3], (hidden_size, hidden_size), jnp.float32) * 0.05,
        "b3": jnp.zeros((1, hidden_size), jnp.float32),
        "w4": jax.random.normal(ks[4], (hidden_size, 1), jnp.float32) * 0.05,
        "b4": jnp.zeros((1, 1), jnp.float32),
    }


def reference_forward(params, input_embeddings, feature_ids, feature_vals,
                      matmul_dtype=jnp.bfloat16):
    # Pure-JAX reference mirroring the PyTorch forward (with the same bf16 matmul
    # operand casts + f32 accumulation that the kernel uses for the DNN tower).
    B, F, E = input_embeddings.shape
    x32 = input_embeddings.astype(jnp.float32)
    square_sum = jnp.sum(x32 ** 2, axis=1)
    sum_square = jnp.sum(x32, axis=1) ** 2
    pred_fm = jnp.mean((sum_square - square_sum) / 2.0, axis=1)
    biases = params["feature_biases"][feature_ids][..., 0] * feature_vals
    pred_fm = pred_fm + jnp.sum(biases, axis=1) + params["bias"][0]
    x = x32.reshape(B, F * E)
    mdt = matmul_dtype
    h = jax.nn.relu(jnp.dot(x.astype(mdt), params["w1"].astype(mdt),
                            preferred_element_type=jnp.float32) + params["b1"])
    h = jax.nn.relu(jnp.dot(h.astype(mdt), params["w2"].astype(mdt),
                            preferred_element_type=jnp.float32) + params["b2"])
    h = jax.nn.relu(jnp.dot(h.astype(mdt), params["w3"].astype(mdt),
                            preferred_element_type=jnp.float32) + params["b3"])
    pred_dnn = (jnp.dot(h, params["w4"], preferred_element_type=jnp.float32)
                + params["b4"])[:, 0]
    return pred_fm + pred_dnn


if __name__ == "__main__":
    B, F, E = 500, 8, 16          # batch (exercises padding + 2-step grid), fields, embed dim
    input_dim = F * E             # 128
    hidden_size = 128
    num_features = 1000

    key = jax.random.PRNGKey(0)
    k_emb, k_ids, k_vals, k_params = jax.random.split(key, 4)

    input_embeddings = jax.random.normal(k_emb, (B, F, E), jnp.float32)
    feature_ids = jax.random.randint(k_ids, (B, F), 0, num_features, jnp.int32)
    feature_vals = jax.random.uniform(k_vals, (B, F), jnp.float32)

    params = init_params(k_params, input_dim, num_features, hidden_size)

    fwd = jax.jit(functools.partial(deepfm_forward, tile_b=256))
    out = jax.block_until_ready(fwd(params, input_embeddings, feature_ids, feature_vals))

    ref = reference_forward(params, input_embeddings, feature_ids, feature_vals)
    assert out.shape == (B,), out.shape
    max_err = float(jnp.max(jnp.abs(out - ref)))
    assert jnp.allclose(out, ref, atol=1e-2, rtol=1e-2), max_err

    print("KERNEL_OK")
</pallas_src>

<mosaic_0001>
module attributes {stable_mosaic.version = 11 : i64} {
  func.func @deepfm_kernel(%arg0: i32, %arg1: memref<256x128xf32, #tpu.memory_space<vmem>>, %arg2: memref<256x1xf32, #tpu.memory_space<vmem>>, %arg3: memref<128x128xf32, #tpu.memory_space<vmem>>, %arg4: memref<128x128xbf16, #tpu.memory_space<vmem>>, %arg5: memref<1x128xf32, #tpu.memory_space<vmem>>, %arg6: memref<128x128xbf16, #tpu.memory_space<vmem>>, %arg7: memref<1x128xf32, #tpu.memory_space<vmem>>, %arg8: memref<128x128xbf16, #tpu.memory_space<vmem>>, %arg9: memref<1x128xf32, #tpu.memory_space<vmem>>, %arg10: memref<1x128xf32, #tpu.memory_space<vmem>>, %arg11: memref<256x1xf32, #tpu.memory_space<vmem>>) attributes {dimension_semantics = [#tpu.dimension_semantics<parallel>], iteration_bounds = array<i64: 2>, scalar_prefetch = 0 : i64, scratch_operands = 0 : i64, tpu.core_type = #tpu.core_type<tc>, window_params = [{transform_indices = @transform_0, window_bounds = array<i64: 256, 128>}, {transform_indices = @transform_1, window_bounds = array<i64: 256, 1>}, {pipeline_mode = #tpu.pipeline_mode<synchronous>, transform_indices = @transform_2, window_bounds = array<i64: 128, 128>}, {pipeline_mode = #tpu.pipeline_mode<synchronous>, transform_indices = @transform_3, window_bounds = array<i64: 128, 128>}, {pipeline_mode = #tpu.pipeline_mode<synchronous>, transform_indices = @transform_4, window_bounds = array<i64: 1, 128>}, {pipeline_mode = #tpu.pipeline_mode<synchronous>, transform_indices = @transform_5, window_bounds = array<i64: 128, 128>}, {pipeline_mode = #tpu.pipeline_mode<synchronous>, transform_indices = @transform_6, window_bounds = array<i64: 1, 128>}, {pipeline_mode = #tpu.pipeline_mode<synchronous>, transform_indices = @transform_7, window_bounds = array<i64: 128, 128>}, {pipeline_mode = #tpu.pipeline_mode<synchronous>, transform_indices = @transform_8, window_bounds = array<i64: 1, 128>}, {pipeline_mode = #tpu.pipeline_mode<synchronous>, transform_indices = @transform_9, window_bounds = array<i64: 1, 128>}, {transform_indices = @transform_10, window_bounds = array<i64: 256, 1>}]} {
    %c0 = arith.constant 0 : index
    %c0_0 = arith.constant 0 : index
    %0 = vector.load %arg1[%c0, %c0_0] : memref<256x128xf32, #tpu.memory_space<vmem>>, vector<256x128xf32>
    %c0_1 = arith.constant 0 : index
    %c0_2 = arith.constant 0 : index
    %1 = vector.load %arg3[%c0_1, %c0_2] : memref<128x128xf32, #tpu.memory_space<vmem>>, vector<128x128xf32>
    %cst = arith.constant dense<0.000000e+00> : vector<256x128xf32>
    %2 = tpu.matmul %0, %1, %cst {dimension_numbers = #tpu.dot_dimension_numbers<[1], [0], [0], [1], [0, 0, 1, 1], [], []>} : vector<256x128xf32>, vector<128x128xf32>, vector<256x128xf32> -> vector<256x128xf32>
    %3 = arith.mulf %0, %2 : vector<256x128xf32>
    %cst_3 = arith.constant dense<0.000000e+00> : vector<256xf32>
    %4 = vector.multi_reduction <add>, %3, %cst_3 [1] : vector<256x128xf32> to vector<256xf32>
    %5 = vector.shape_cast %4 : vector<256xf32> to vector<256x1xf32>
    %cst_4 = arith.constant 3.125000e-02 : f32
    %6 = vector.broadcast %cst_4 : f32 to vector<256x1xf32>
    %7 = arith.mulf %5, %6 : vector<256x1xf32>
    %8 = arith.truncf %0 : vector<256x128xf32> to vector<256x128xbf16>
    %c0_5 = arith.constant 0 : index
    %c0_6 = arith.constant 0 : index
    %9 = vector.load %arg4[%c0_5, %c0_6] : memref<128x128xbf16, #tpu.memory_space<vmem>>, vector<128x128xbf16>
    %cst_7 = arith.constant dense<0.000000e+00> : vector<256x128xf32>
    %10 = tpu.matmul %8, %9, %cst_7 {dimension_numbers = #tpu.dot_dimension_numbers<[1], [0], [0], [1], [0, 0, 1, 1], [], []>} : vector<256x128xbf16>, vector<128x128xbf16>, vector<256x128xf32> -> vector<256x128xf32>
    %c0_8 = arith.constant 0 : index
    %c0_9 = arith.constant 0 : index
    %11 = vector.load %arg5[%c0_8, %c0_9] : memref<1x128xf32, #tpu.memory_space<vmem>>, vector<1x128xf32>
    %12 = vector.broadcast %11 : vector<1x128xf32> to vector<256x128xf32>
    %13 = arith.addf %10, %12 : vector<256x128xf32>
    %cst_10 = arith.constant 0.000000e+00 : f32
    %14 = vector.broadcast %cst_10 : f32 to vector<256x128xf32>
    %15 = arith.maximumf %13, %14 : vector<256x128xf32>
    %16 = arith.truncf %15 : vector<256x128xf32> to vector<256x128xbf16>
    %c0_11 = arith.constant 0 : index
    %c0_12 = arith.constant 0 : index
    %17 = vector.load %arg6[%c0_11, %c0_12] : memref<128x128xbf16, #tpu.memory_space<vmem>>, vector<128x128xbf16>
    %cst_13 = arith.constant dense<0.000000e+00> : vector<256x128xf32>
    %18 = tpu.matmul %16, %17, %cst_13 {dimension_numbers = #tpu.dot_dimension_numbers<[1], [0], [0], [1], [0, 0, 1, 1], [], []>} : vector<256x128xbf16>, vector<128x128xbf16>, vector<256x128xf32> -> vector<256x128xf32>
    %c0_14 = arith.constant 0 : index
    %c0_15 = arith.constant 0 : index
    %19 = vector.load %arg7[%c0_14, %c0_15] : memref<1x128xf32, #tpu.memory_space<vmem>>, vector<1x128xf32>
    %20 = vector.broadcast %19 : vector<1x128xf32> to vector<256x128xf32>
    %21 = arith.addf %18, %20 : vector<256x128xf32>
    %cst_16 = arith.constant 0.000000e+00 : f32
    %22 = vector.broadcast %cst_16 : f32 to vector<256x128xf32>
    %23 = arith.maximumf %21, %22 : vector<256x128xf32>
    %24 = arith.truncf %23 : vector<256x128xf32> to vector<256x128xbf16>
    %c0_17 = arith.constant 0 : index
    %c0_18 = arith.constant 0 : index
    %25 = vector.load %arg8[%c0_17, %c0_18] : memref<128x128xbf16, #tpu.memory_space<vmem>>, vector<128x128xbf16>
    %cst_19 = arith.constant dense<0.000000e+00> : vector<256x128xf32>
    %26 = tpu.matmul %24, %25, %cst_19 {dimension_numbers = #tpu.dot_dimension_numbers<[1], [0], [0], [1], [0, 0, 1, 1], [], []>} : vector<256x128xbf16>, vector<128x128xbf16>, vector<256x128xf32> -> vector<256x128xf32>
    %c0_20 = arith.constant 0 : index
    %c0_21 = arith.constant 0 : index
    %27 = vector.load %arg9[%c0_20, %c0_21] : memref<1x128xf32, #tpu.memory_space<vmem>>, vector<1x128xf32>
    %28 = vector.broadcast %27 : vector<1x128xf32> to vector<256x128xf32>
    %29 = arith.addf %26, %28 : vector<256x128xf32>
    %cst_22 = arith.constant 0.000000e+00 : f32
    %30 = vector.broadcast %cst_22 : f32 to vector<256x128xf32>
    %31 = arith.maximumf %29, %30 : vector<256x128xf32>
    %c0_23 = arith.constant 0 : index
    %c0_24 = arith.constant 0 : index
    %32 = vector.load %arg10[%c0_23, %c0_24] : memref<1x128xf32, #tpu.memory_space<vmem>>, vector<1x128xf32>
    %33 = vector.broadcast %32 : vector<1x128xf32> to vector<256x128xf32>
    %34 = arith.mulf %31, %33 : vector<256x128xf32>
    %cst_25 = arith.constant dense<0.000000e+00> : vector<256xf32>
    %35 = vector.multi_reduction <add>, %34, %cst_25 [1] : vector<256x128xf32> to vector<256xf32>
    %36 = vector.shape_cast %35 : vector<256xf32> to vector<256x1xf32>
    %c0_26 = arith.constant 0 : index
    %c0_27 = arith.constant 0 : index
    %37 = vector.load %arg2[%c0_26, %c0_27] : memref<256x1xf32, #tpu.memory_space<vmem>>, vector<256x1xf32>
    %38 = arith.addf %37, %7 : vector<256x1xf32>
    %39 = arith.addf %38, %36 : vector<256x1xf32>
    %c0_28 = arith.constant 0 : index
    %c0_29 = arith.constant 0 : index
    %40 = vector.load %arg11[%c0_28, %c0_29] : memref<256x1xf32, #tpu.memory_space<vmem>>, vector<256x1xf32>
    tpu.vector_store %arg11[%c0_28, %c0_29], %39 {strides = array<i32>} : memref<256x1xf32, #tpu.memory_space<vmem>>, vector<256x1xf32>,
    return
  }
  func.func @transform_0(%arg0: i32) -> (i32, i32) {
    %c0_i32 = arith.constant 0 : i32
    %c0_i32_0 = arith.constant 0 : i32
    return %arg0, %c0_i32 : i32, i32
  }
  func.func @transform_1(%arg0: i32) -> (i32, i32) {
    %c0_i32 = arith.constant 0 : i32
    %c0_i32_0 = arith.constant 0 : i32
    return %arg0, %c0_i32 : i32, i32
  }
  func.func @transform_2(%arg0: i32) -> (i32, i32) {
    %c0_i32 = arith.constant 0 : i32
    %c0_i32_0 = arith.constant 0 : i32
    %c0_i32_1 = arith.constant 0 : i32
    return %c0_i32, %c0_i32_0 : i32, i32
  }
  func.func @transform_3(%arg0: i32) -> (i32, i32) {
    %c0_i32 = arith.constant 0 : i32
    %c0_i32_0 = arith.constant 0 : i32
    %c0_i32_1 = arith.constant 0 : i32
    return %c0_i32, %c0_i32_0 : i32, i32
  }
  func.func @transform_4(%arg0: i32) -> (i32, i32) {
    %c0_i32 = arith.constant 0 : i32
    %c0_i32_0 = arith.constant 0 : i32
    %c0_i32_1 = arith.constant 0 : i32
    return %c0_i32, %c0_i32_0 : i32, i32
  }
  func.func @transform_5(%arg0: i32) -> (i32, i32) {
    %c0_i32 = arith.constant 0 : i32
    %c0_i32_0 = arith.constant 0 : i32
    %c0_i32_1 = arith.constant 0 : i32
    return %c0_i32, %c0_i32_0 : i32, i32
  }
  func.func @transform_6(%arg0: i32) -> (i32, i32) {
    %c0_i32 = arith.constant 0 : i32
    %c0_i32_0 = arith.constant 0 : i32
    %c0_i32_1 = arith.constant 0 : i32
    return %c0_i32, %c0_i32_0 : i32, i32
  }
  func.func @transform_7(%arg0: i32) -> (i32, i32) {
    %c0_i32 = arith.constant 0 : i32
    %c0_i32_0 = arith.constant 0 : i32
    %c0_i32_1 = arith.constant 0 : i32
    return %c0_i32, %c0_i32_0 : i32, i32
  }
  func.func @transform_8(%arg0: i32) -> (i32, i32) {
    %c0_i32 = arith.constant 0 : i32
    %c0_i32_0 = arith.constant 0 : i32
    %c0_i32_1 = arith.constant 0 : i32
    return %c0_i32, %c0_i32_0 : i32, i32
  }
  func.func @transform_9(%arg0: i32) -> (i32, i32) {
    %c0_i32 = arith.constant 0 : i32
    %c0_i32_0 = arith.constant 0 : i32
    %c0_i32_1 = arith.constant 0 : i32
    return %c0_i32, %c0_i32_0 : i32, i32
  }
  func.func @transform_10(%arg0: i32) -> (i32, i32) {
    %c0_i32 = arith.constant 0 : i32
    %c0_i32_0 = arith.constant 0 : i32
    return %arg0, %c0_i32 : i32, i32
  }
}

</mosaic_0001>

<llo_original>
// kernel: squeeze.4
$region0: #{squeeze.4}
  %s0 = inlined_call_operand.vmem [shape: f32[4000], index: 0, kind: input, shape index: {}]
  %s1 = inlined_call_operand.vmem [shape: f32[500,8], index: 1, kind: output, shape index: {}]
  %v2 = vld [vmem:[%s0] sm:$0xff]
  %vm3 = vcmask 64512
  %4 = vst.msk [vmem:[%s1] ss:$16 sm:$0x3] %vm3, %v2
  %5 = vst.msk [vmem:[%s1] ss:$16 sm:$0xc] %vm3, %v2
  %6 = vst.msk [vmem:[%s1] ss:$16 sm:$0x30] %vm3, %v2
  %7 = vst.msk [vmem:[%s1] ss:$16 sm:$0xc0] %vm3, %v2
  %s8 = scalar_lea.vmem %s0, 8
  %v9 = vld [vmem:[%s8] sm:$0xff]
  %vm10 = vcmask 64512
  %s11 = scalar_lea.vmem %s1, 128
  %12 = vst.msk [vmem:[%s11] ss:$16 sm:$0x3] %vm10, %v9
  %s13 = scalar_lea.vmem %s1, 128
  %14 = vst.msk [vmem:[%s13] ss:$16 sm:$0xc] %vm10, %v9
  %s15 = scalar_lea.vmem %s1, 128
  %16 = vst.msk [vmem:[%s15] ss:$16 sm:$0x30] %vm10, %v9
  %s17 = scalar_lea.vmem %s1, 128
  %18 = vst.msk [vmem:[%s17] ss:$16 sm:$0xc0] %vm10, %v9
  %s19 = scalar_lea.vmem %s0, 16
  %v20 = vld [vmem:[%s19] sm:$0xff]
  %vm21 = vcmask 64512
  %s22 = scalar_lea.vmem %s1, 256
  %23 = vst.msk [vmem:[%s22] ss:$16 sm:$0x3] %vm21, %v20
  %s24 = scalar_lea.vmem %s1, 256
  %25 = vst.msk [vmem:[%s24] ss:$16 sm:$0xc] %vm21, %v20
  %s26 = scalar_lea.vmem %s1, 256
  %27 = vst.msk [vmem:[%s26] ss:$16 sm:$0x30] %vm21, %v20
  %s28 = scalar_lea.vmem %s1, 256
  %29 = vst.msk [vmem:[%s28] ss:$16 sm:$0xc0] %vm21, %v20
  %s30 = scalar_lea.vmem %s0, 24
  %v31 = vld [vmem:[%s30] sm:$0xff]
  %vm32 = vcmask 64512
  %s33 = scalar_lea.vmem %s1, 384
  %34 = vst.msk [vmem:[%s33] ss:$16 sm:$0x3] %vm32, %v31
  %s35 = scalar_lea.vmem %s1, 384
  %36 = vst.msk [vmem:[%s35] ss:$16 sm:$0xc] %vm32, %v31
  %s37 = scalar_lea.vmem %s1, 384
  %38 = vst.msk [vmem:[%s37] ss:$16 sm:$0x30] %vm32, %v31
  %s39 = scalar_lea.vmem %s1, 384
  %40 = vst.msk [vmem:[%s39] ss:$16 sm:$0xc0] %vm32, %v31
  %v41 = vld [vmem:[%s0] sm:$0xff]
  %42 = vrot.lane.b32.xlu0 %v41, 120
  %v43 = vpop.permute.xlu0 %42
  %vm44 = vcmask 64512
  %s45 = scalar_lea.vmem %s1, 1
  %46 = vst.msk [vmem:[%s45] ss:$16 sm:$0x3] %vm44, %v43
  %s47 = scalar_lea.vmem %s1, 1
  %48 = vst.msk [vmem:[%s47] ss:$16 sm:$0xc] %vm44, %v43
  %s49 = scalar_lea.vmem %s1, 1
  %50 = vst.msk [vmem:[%s49] ss:$16 sm:$0x30] %vm44, %v43
  %s51 = scalar_lea.vmem %s1, 1
  %52 = vst.msk [vmem:[%s51] ss:$16 sm:$0xc0] %vm44, %v43
  %s53 = scalar_lea.vmem %s0, 8
  %v54 = vld [vmem:[%s53] sm:$0xff]
  %55 = vrot.lane.b32.xlu0 %v54, 120
  %v56 = vpop.permute.xlu0 %55
  %vm57 = vcmask 64512
  %s58 = scalar_lea.vmem %s1, 129
  %59 = vst.msk [vmem:[%s58] ss:$16 sm:$0x3] %vm57, %v56
  %s60 = scalar_lea.vmem %s1, 129
  %61 = vst.msk [vmem:[%s60] ss:$16 sm:$0xc] %vm57, %v56
  %s62 = scalar_lea.vmem %s1, 129
  %63 = vst.msk [vmem:[%s62] ss:$16 sm:$0x30] %vm57, %v56
  %s64 = scalar_lea.vmem %s1, 129
  %65 = vst.msk [vmem:[%s64] ss:$16 sm:$0xc0] %vm57, %v56
  %s66 = scalar_lea.vmem %s0, 16
  %v67 = vld [vmem:[%s66] sm:$0xff]
  %68 = vrot.lane.b32.xlu0 %v67, 120
  %v69 = vpop.permute.xlu0 %68
  %vm70 = vcmask 64512
  %s71 = scalar_lea.vmem %s1, 257
  %72 = vst.msk [vmem:[%s71] ss:$16 sm:$0x3] %vm70, %v69
  %s73 = scalar_lea.vmem %s1, 257
  %74 = vst.msk [vmem:[%s73] ss:$16 sm:$0xc] %vm70, %v69
  %s75 = scalar_lea.vmem %s1, 257
  %76 = vst.msk [vmem:[%s75] ss:$16 sm:$0x30] %vm70, %v69
  %s77 = scalar_lea.vmem %s1, 257
  %78 = vst.msk [vmem:[%s77] ss:$16 sm:$0xc0] %vm70, %v69
  %s79 = scalar_lea.vmem %s0, 24
  %v80 = vld [vmem:[%s79] sm:$0xff]
  %81 = vrot.lane.b32.xlu0 %v80, 120
  %v82 = vpop.permute.xlu0 %81
  %vm83 = vcmask 64512
  %s84 = scalar_lea.vmem %s1, 385
  %85 = vst.msk [vmem:[%s84] ss:$16 sm:$0x3] %vm83, %v82
  %s86 = scalar_lea.vmem %s1, 385
  %87 = vst.msk [vmem:[%s86] ss:$16 sm:$0xc] %vm83, %v82
  %s88 = scalar_lea.vmem %s1, 385
  %89 = vst.msk [vmem:[%s88] ss:$16 sm:$0x30] %vm83, %v82
  %s90 = scalar_lea.vmem %s1, 385
  %91 = vst.msk [vmem:[%s90] ss:$16 sm:$0xc0] %vm83, %v82
  %v92 = vld [vmem:[%s0] sm:$0xff]
  %93 = vrot.lane.b32.xlu0 %v92, 112
  %v94 = vpop.permute.xlu0 %93
  %vm95 = vcmask 64512
  %s96 = scalar_lea.vmem %s1, 2
  %97 = vst.msk [vmem:[%s96] ss:$16 sm:$0x3] %vm95, %v94
  %s98 = scalar_lea.vmem %s1, 2
  %99 = vst.msk [vmem:[%s98] ss:$16 sm:$0xc] %vm95, %v94
  %s100 = scalar_lea.vmem %s1, 2
  %101 = vst.msk [vmem:[%s100] ss:$16 sm:$0x30] %vm95, %v94
  %s102 = scalar_lea.vmem %s1, 2
  %103 = vst.msk [vmem:[%s102] ss:$16 sm:$0xc0] %vm95, %v94
  %s104 = scalar_lea.vmem %s0, 8
  %v105 = vld [vmem:[%s104] sm:$0xff]
  %106 = vrot.lane.b32.xlu0 %v105, 112
  %v107 = vpop.permute.xlu0 %106
  %vm108 = vcmask 64512
  %s109 = scalar_lea.vmem %s1, 130
  %110 = vst.msk [vmem:[%s109] ss:$16 sm:$0x3] %vm108, %v107
  %s111 = scalar_lea.vmem %s1, 130
  %112 = vst.msk [vmem:[%s111] ss:$16 sm:$0xc] %vm108, %v107
  %s113 = scalar_lea.vmem %s1, 130
  %114 = vst.msk [vmem:[%s113] ss:$16 sm:$0x30] %vm108, %v107
  %s115 = scalar_lea.vmem %s1, 130
  %116 = vst.msk [vmem:[%s115] ss:$16 sm:$0xc0] %vm108, %v107
  %s117 = scalar_lea.vmem %s0, 16
  %v118 = vld [vmem:[%s117] sm:$0xff]
  %119 = vrot.lane.b32.xlu0 %v118, 112
  %v120 = vpop.permute.xlu0 %119
  %vm121 = vcmask 64512
  %s122 = scalar_lea.vmem %s1, 258
  %123 = vst.msk [vmem:[%s122] ss:$16 sm:$0x3] %vm121, %v120
  %s124 = scalar_lea.vmem %s1, 258
  %125 = vst.msk [vmem:[%s124] ss:$16 sm:$0xc] %vm121, %v120
  %s126 = scalar_lea.vmem %s1, 258
  %127 = vst.msk [vmem:[%s126] ss:$16 sm:$0x30] %vm121, %v120
  %s128 = scalar_lea.vmem %s1, 258
  %129 = vst.msk [vmem:[%s128] ss:$16 sm:$0xc0] %vm121, %v120
  %s130 = scalar_lea.vmem %s0, 24
  %v131 = vld [vmem:[%s130] sm:$0xff]
  %132 = vrot.lane.b32.xlu0 %v131, 112
  %v133 = vpop.permute.xlu0 %132
  %vm134 = vcmask 64512
  %s135 = scalar_lea.vmem %s1, 386
  %136 = vst.msk [vmem:[%s135] ss:$16 sm:$0x3] %vm134, %v133
  %s137 = scalar_lea.vmem %s1, 386
  %138 = vst.msk [vmem:[%s137] ss:$16 sm:$0xc] %vm134, %v133
  %s139 = scalar_lea.vmem %s1, 386
  %140 = vst.msk [vmem:[%s139] ss:$16 sm:$0x30] %vm134, %v133
  %s141 = scalar_lea.vmem %s1, 386
  %142 = vst.msk [vmem:[%s141] ss:$16 sm:$0xc0] %vm134, %v133
  %v143 = vld [vmem:[%s0] sm:$0xff]
  %144 = vrot.lane.b32.xlu0 %v143, 104
  %v145 = vpop.permute.xlu0 %144
  %vm146 = vcmask 64512
  %s147 = scalar_lea.vmem %s1, 3
  %148 = vst.msk [vmem:[%s147] ss:$16 sm:$0x3] %vm146, %v145
  %s149 = scalar_lea.vmem %s1, 3
  %150 = vst.msk [vmem:[%s149] ss:$16 sm:$0xc] %vm146, %v145
  %s151 = scalar_lea.vmem %s1, 3
  %152 = vst.msk [vmem:[%s151] ss:$16 sm:$0x30] %vm146, %v145
  %s153 = scalar_lea.vmem %s1, 3
  %154 = vst.msk [vmem:[%s153] ss:$16 sm:$0xc0] %vm146, %v145
  %s155 = scalar_lea.vmem %s0, 8
  %v156 = vld [vmem:[%s155] sm:$0xff]
  %157 = vrot.lane.b32.xlu0 %v156, 104
  %v158 = vpop.permute.xlu0 %157
  %vm159 = vcmask 64512
  %s160 = scalar_lea.vmem %s1, 131
  %161 = vst.msk [vmem:[%s160] ss:$16 sm:$0x3] %vm159, %v158
  %s162 = scalar_lea.vmem %s1, 131
  %163 = vst.msk [vmem:[%s162] ss:$16 sm:$0xc] %vm159, %v158
  %s164 = scalar_lea.vmem %s1, 131
  %165 = vst.msk [vmem:[%s164] ss:$16 sm:$0x30] %vm159, %v158
  %s166 = scalar_lea.vmem %s1, 131
  %167 = vst.msk [vmem:[%s166] ss:$16 sm:$0xc0] %vm159, %v158
  %s168 = scalar_lea.vmem %s0, 16
  %v169 = vld [vmem:[%s168] sm:$0xff]
  %170 = vrot.lane.b32.xlu0 %v169, 104
  %v171 = vpop.permute.xlu0 %170
  %vm172 = vcmask 64512
  %s173 = scalar_lea.vmem %s1, 259
  %174 = vst.msk [vmem:[%s173] ss:$16 sm:$0x3] %vm172, %v171
  %s175 = scalar_lea.vmem %s1, 259
  %176 = vst.msk [vmem:[%s175] ss:$16 sm:$0xc] %vm172, %v171
  %s177 = scalar_lea.vmem %s1, 259
  %178 = vst.msk [vmem:[%s177] ss:$16 sm:$0x30] %vm172, %v171
  %s179 = scalar_lea.vmem %s1, 259
  %180 = vst.msk [vmem:[%s179] ss:$16 sm:$0xc0] %vm172, %v171
  %s181 = scalar_lea.vmem %s0, 24
  %v182 = vld [vmem:[%s181] sm:$0xff]
  %183 = vrot.lane.b32.xlu0 %v182, 104
  %v184 = vpop.permute.xlu0 %183
  %vm185 = vcmask 64512
  %s186 = scalar_lea.vmem %s1, 387
  %187 = vst.msk [vmem:[%s186] ss:$16 sm:$0x3] %vm185, %v184
  %s188 = scalar_lea.vmem %s1, 387
  %189 = vst.msk [vmem:[%s188] ss:$16 sm:$0xc] %vm185, %v184
  %s190 = scalar_lea.vmem %s1, 387
  %191 = vst.msk [vmem:[%s190] ss:$16 sm:$0x30] %vm185, %v184
  %s192 = scalar_lea.vmem %s1, 387
  %193 = vst.msk [vmem:[%s192] ss:$16 sm:$0xc0] %vm185, %v184
  %v194 = vld [vmem:[%s0] sm:$0xff]
  %195 = vrot.lane.b32.xlu0 %v194, 96
  %v196 = vpop.permute.xlu0 %195
  %vm197 = vcmask 64512
  %s198 = scalar_lea.vmem %s1, 4
  %199 = vst.msk [vmem:[%s198] ss:$16 sm:$0x3] %vm197, %v196
  %s200 = scalar_lea.vmem %s1, 4
  %201 = vst.msk [vmem:[%s200] ss:$16 sm:$0xc] %vm197, %v196
  %s202 = scalar_lea.vmem %s1, 4
  %203 = vst.msk [vmem:[%s202] ss:$16 sm:$0x30] %vm197, %v196
  %s204 = scalar_lea.vmem %s1, 4
  %205 = vst.msk [vmem:[%s204] ss:$16 sm:$0xc0] %vm197, %v196
  %s206 = scalar_lea.vmem %s0, 8
  %v207 = vld [vmem:[%s206] sm:$0xff]
  %208 = vrot.lane.b32.xlu0 %v207, 96
  %v209 = vpop.permute.xlu0 %208
  %vm210 = vcmask 64512
  %s211 = scalar_lea.vmem %s1, 132
  %212 = vst.msk [vmem:[%s211] ss:$16 sm:$0x3] %vm210, %v209
  %s213 = scalar_lea.vmem %s1, 132
  %214 = vst.msk [vmem:[%s213] ss:$16 sm:$0xc] %vm210, %v209
  %s215 = scalar_lea.vmem %s1, 132
  %216 = vst.msk [vmem:[%s215] ss:$16 sm:$0x30] %vm210, %v209
  %s217 = scalar_lea.vmem %s1, 132
  %218 = vst.msk [vmem:[%s217] ss:$16 sm:$0xc0] %vm210, %v209
  %s219 = scalar_lea.vmem %s0, 16
  %v220 = vld [vmem:[%s219] sm:$0xff]
  %221 = vrot.lane.b32.xlu0 %v220, 96
  %v222 = vpop.permute.xlu0 %221
  %vm223 = vcmask 64512
  %s224 = scalar_lea.vmem %s1, 260
  %225 = vst.msk [vmem:[%s224] ss:$16 sm:$0x3] %vm223, %v222
  %s226 = scalar_lea.vmem %s1, 260
  %227 = vst.msk [vmem:[%s226] ss:$16 sm:$0xc] %vm223, %v222
  %s228 = scalar_lea.vmem %s1, 260
  %229 = vst.msk [vmem:[%s228] ss:$16 sm:$0x30] %vm223, %v222
  %s230 = scalar_lea.vmem %s1, 260
  %231 = vst.msk [vmem:[%s230] ss:$16 sm:$0xc0] %vm223, %v222
  %s232 = scalar_lea.vmem %s0, 24
  %v233 = vld [vmem:[%s232] sm:$0x7f]
  %234 = vrot.lane.b32.xlu0 %v233, 96
  %v235 = vpop.permute.xlu0 %234
  %vm236 = vcmask 64512
  %s237 = scalar_lea.vmem %s1, 388
  %238 = vst.msk [vmem:[%s237] ss:$16 sm:$0x3] %vm236, %v235
  %s239 = scalar_lea.vmem %s1, 388
  %240 = vst.msk [vmem:[%s239] ss:$16 sm:$0xc] %vm236, %v235
  %s241 = scalar_lea.vmem %s1, 388
  %242 = vst.msk [vmem:[%s241] ss:$16 sm:$0x30] %vm236, %v235
  %s243 = scalar_lea.vmem %s1, 478
  %244 = vst.msk [vmem:[%s243] sm:$0x40] %vm236, %v235
  %v245 = vld [vmem:[%s0] sm:$0xff]
  %246 = vrot.lane.b32.xlu0 %v245, 88
  %v247 = vpop.permute.xlu0 %246
  %vm248 = vcmask 64512
  %s249 = scalar_lea.vmem %s1, 5
  %250 = vst.msk [vmem:[%s249] ss:$16 sm:$0x3] %vm248, %v247
  %s251 = scalar_lea.vmem %s1, 5
  %252 = vst.msk [vmem:[%s251] ss:$16 sm:$0xc] %vm248, %v247
  %s253 = scalar_lea.vmem %s1, 5
  %254 = vst.msk [vmem:[%s253] ss:$16 sm:$0x30] %vm248, %v247
  %s255 = scalar_lea.vmem %s1, 5
  %256 = vst.msk [vmem:[%s255] ss:$16 sm:$0xc0] %vm248, %v247
  %s257 = scalar_lea.vmem %s0, 8
  %v258 = vld [vmem:[%s257] sm:$0xff]
  %259 = vrot.lane.b32.xlu0 %v258, 88
  %v260 = vpop.permute.xlu0 %259
  %vm261 = vcmask 64512
  %s262 = scalar_lea.vmem %s1, 133
  %263 = vst.msk [vmem:[%s262] ss:$16 sm:$0x3] %vm261, %v260
  %s264 = scalar_lea.vmem %s1, 133
  %265 = vst.msk [vmem:[%s264] ss:$16 sm:$0xc] %vm261, %v260
  %s266 = scalar_lea.vmem %s1, 133
  %267 = vst.msk [vmem:[%s266] ss:$16 sm:$0x30] %vm261, %v260
  %s268 = scalar_lea.vmem %s1, 133
  %269 = vst.msk [vmem:[%s268] ss:$16 sm:$0xc0] %vm261, %v260
  %s270 = scalar_lea.vmem %s0, 16
  %v271 = vld [vmem:[%s270] sm:$0xff]
  %272 = vrot.lane.b32.xlu0 %v271, 88
  %v273 = vpop.permute.xlu0 %272
  %vm274 = vcmask 64512
  %s275 = scalar_lea.vmem %s1, 261
  %276 = vst.msk [vmem:[%s275] ss:$16 sm:$0x3] %vm274, %v273
  %s277 = scalar_lea.vmem %s1, 261
  %278 = vst.msk [vmem:[%s277] ss:$16 sm:$0xc] %vm274, %v273
  %s279 = scalar_lea.vmem %s1, 261
  %280 = vst.msk [vmem:[%s279] ss:$16 sm:$0x30] %vm274, %v273
  %s281 = scalar_lea.vmem %s1, 261
  %282 = vst.msk [vmem:[%s281] ss:$16 sm:$0xc0] %vm274, %v273
  %s283 = scalar_lea.vmem %s0, 24
  %v284 = vld [vmem:[%s283] sm:$0x7f]
  %285 = vrot.lane.b32.xlu0 %v284, 88
  %v286 = vpop.permute.xlu0 %285
  %vm287 = vcmask 64512
  %s288 = scalar_lea.vmem %s1, 389
  %289 = vst.msk [vmem:[%s288] ss:$16 sm:$0x3] %vm287, %v286
  %s290 = scalar_lea.vmem %s1, 389
  %291 = vst.msk [vmem:[%s290] ss:$16 sm:$0xc] %vm287, %v286
  %s292 = scalar_lea.vmem %s1, 389
  %293 = vst.msk [vmem:[%s292] ss:$16 sm:$0x30] %vm287, %v286
  %s294 = scalar_lea.vmem %s1, 479
  %295 = vst.msk [vmem:[%s294] sm:$0x40] %vm287, %v286
  %v296 = vld [vmem:[%s0] sm:$0xff]
  %297 = vrot.lane.b32.xlu0 %v296, 80
  %v298 = vpop.permute.xlu0 %297
  %vm299 = vcmask 64512
  %s300 = scalar_lea.vmem %s1, 6
  %301 = vst.msk [vmem:[%s300] ss:$16 sm:$0x3] %vm299, %v298
  %s302 = scalar_lea.vmem %s1, 6
  %303 = vst.msk [vmem:[%s302] ss:$16 sm:$0xc] %vm299, %v298
  %s304 = scalar_lea.vmem %s1, 6
  %305 = vst.msk [vmem:[%s304] ss:$16 sm:$0x30] %vm299, %v298
  %s306 = scalar_lea.vmem %s1, 6
  %307 = vst.msk [vmem:[%s306] ss:$16 sm:$0xc0] %vm299, %v298
  %s308 = scalar_lea.vmem %s0, 8
  %v309 = vld [vmem:[%s308] sm:$0xff]
  %310 = vrot.lane.b32.xlu0 %v309, 80
  %v311 = vpop.permute.xlu0 %310
  %vm312 = vcmask 64512
  %s313 = scalar_lea.vmem %s1, 134
  %314 = vst.msk [vmem:[%s313] ss:$16 sm:$0x3] %vm312, %v311
  %s315 = scalar_lea.vmem %s1, 134
  %316 = vst.msk [vmem:[%s315] ss:$16 sm:$0xc] %vm312, %v311
  %s317 = scalar_lea.vmem %s1, 134
  %318 = vst.msk [vmem:[%s317] ss:$16 sm:$0x30] %vm312, %v311
  %s319 = scalar_lea.vmem %s1, 134
  %320 = vst.msk [vmem:[%s319] ss:$16 sm:$0xc0] %vm312, %v311
  %s321 = scalar_lea.vmem %s0, 16
  %v322 = vld [vmem:[%s321] sm:$0xff]
  %323 = vrot.lane.b32.xlu0 %v322, 80
  %v324 = vpop.permute.xlu0 %323
  %vm325 = vcmask 64512
  %s326 = scalar_lea.vmem %s1, 262
  %327 = vst.msk [vmem:[%s326] ss:$16 sm:$0x3] %vm325, %v324
  %s328 = scalar_lea.vmem %s1, 262
  %329 = vst.msk [vmem:[%s328] ss:$16 sm:$0xc] %vm325, %v324
  %s330 = scalar_lea.vmem %s1, 262
  %331 = vst.msk [vmem:[%s330] ss:$16 sm:$0x30] %vm325, %v324
  %s332 = scalar_lea.vmem %s1, 262
  %333 = vst.msk [vmem:[%s332] ss:$16 sm:$0xc0] %vm325, %v324
  %s334 = scalar_lea.vmem %s0, 24
  %v335 = vld [vmem:[%s334] sm:$0x7f]
  %336 = vrot.lane.b32.xlu0 %v335, 80
  %v337 = vpop.permute.xlu0 %336
  %vm338 = vcmask 64512
  %s339 = scalar_lea.vmem %s1, 390
  %340 = vst.msk [vmem:[%s339] ss:$16 sm:$0x3] %vm338, %v337
  %s341 = scalar_lea.vmem %s1, 390
  %342 = vst.msk [vmem:[%s341] ss:$16 sm:$0xc] %vm338, %v337
  %s343 = scalar_lea.vmem %s1, 390
  %344 = vst.msk [vmem:[%s343] ss:$16 sm:$0x30] %vm338, %v337
  %s345 = scalar_lea.vmem %s1, 480
  %346 = vst.msk [vmem:[%s345] sm:$0x40] %vm338, %v337
  %v347 = vld [vmem:[%s0] sm:$0xff]
  %348 = vrot.lane.b32.xlu0 %v347, 72
  %v349 = vpop.permute.xlu0 %348
  %vm350 = vcmask 64512
  %s351 = scalar_lea.vmem %s1, 7
  %352 = vst.msk [vmem:[%s351] ss:$16 sm:$0x3] %vm350, %v349
  %s353 = scalar_lea.vmem %s1, 7
  %354 = vst.msk [vmem:[%s353] ss:$16 sm:$0xc] %vm350, %v349
  %s355 = scalar_lea.vmem %s1, 7
  %356 = vst.msk [vmem:[%s355] ss:$16 sm:$0x30] %vm350, %v349
  %s357 = scalar_lea.vmem %s1, 7
  %358 = vst.msk [vmem:[%s357] ss:$16 sm:$0xc0] %vm350, %v349
  %s359 = scalar_lea.vmem %s0, 8
  %v360 = vld [vmem:[%s359] sm:$0xff]
  %361 = vrot.lane.b32.xlu0 %v360, 72
  %v362 = vpop.permute.xlu0 %361
  %vm363 = vcmask 64512
  %s364 = scalar_lea.vmem %s1, 135
  %365 = vst.msk [vmem:[%s364] ss:$16 sm:$0x3] %vm363, %v362
  %s366 = scalar_lea.vmem %s1, 135
  %367 = vst.msk [vmem:[%s366] ss:$16 sm:$0xc] %vm363, %v362
  %s368 = scalar_lea.vmem %s1, 135
  %369 = vst.msk [vmem:[%s368] ss:$16 sm:$0x30] %vm363, %v362
  %s370 = scalar_lea.vmem %s1, 135
  %371 = vst.msk [vmem:[%s370] ss:$16 sm:$0xc0] %vm363, %v362
  %s372 = scalar_lea.vmem %s0, 16
  %v373 = vld [vmem:[%s372] sm:$0xff]
  %374 = vrot.lane.b32.xlu0 %v373, 72
  %v375 = vpop.permute.xlu0 %374
  %vm376 = vcmask 64512
  %s377 = scalar_lea.vmem %s1, 263
  %378 = vst.msk [vmem:[%s377] ss:$16 sm:$0x3] %vm376, %v375
  %s379 = scalar_lea.vmem %s1, 263
  %380 = vst.msk [vmem:[%s379] ss:$16 sm:$0xc] %vm376, %v375
  %s381 = scalar_lea.vmem %s1, 263
  %382 = vst.msk [vmem:[%s381] ss:$16 sm:$0x30] %vm376, %v375
  %s383 = scalar_lea.vmem %s1, 263
  %384 = vst.msk [vmem:[%s383] ss:$16 sm:$0xc0] %vm376, %v375
  %s385 = scalar_lea.vmem %s0, 24
  %v386 = vld [vmem:[%s385] sm:$0x7f]
  %387 = vrot.lane.b32.xlu0 %v386, 72
  %v388 = vpop.permute.xlu0 %387
  %vm389 = vcmask 64512
  %s390 = scalar_lea.vmem %s1, 391
  %391 = vst.msk [vmem:[%s390] ss:$16 sm:$0x3] %vm389, %v388
  %s392 = scalar_lea.vmem %s1, 391
  %393 = vst.msk [vmem:[%s392] ss:$16 sm:$0xc] %vm389, %v388
  %s394 = scalar_lea.vmem %s1, 391
  %395 = vst.msk [vmem:[%s394] ss:$16 sm:$0x30] %vm389, %v388
  %s396 = scalar_lea.vmem %s1, 481
  %397 = vst.msk [vmem:[%s396] sm:$0x40] %vm389, %v388
  %v398 = vld [vmem:[%s0] sm:$0xff]
  %399 = vrot.lane.b32.xlu0 %v398, 64
  %v400 = vpop.permute.xlu0 %399
  %vm401 = vcmask 64512
  %s402 = scalar_lea.vmem %s1, 8
  %403 = vst.msk [vmem:[%s402] ss:$16 sm:$0x3] %vm401, %v400
  %s404 = scalar_lea.vmem %s1, 8
  %405 = vst.msk [vmem:[%s404] ss:$16 sm:$0xc] %vm401, %v400
  %s406 = scalar_lea.vmem %s1, 8
  %407 = vst.msk [vmem:[%s406] ss:$16 sm:$0x30] %vm401, %v400
  %s408 = scalar_lea.vmem %s1, 8
  %409 = vst.msk [vmem:[%s408] ss:$16 sm:$0xc0] %vm401, %v400
  %s410 = scalar_lea.vmem %s0, 8
  %v411 = vld [vmem:[%s410] sm:$0xff]
  %412 = vrot.lane.b32.xlu0 %v411, 64
  %v413 = vpop.permute.xlu0 %412
  %vm414 = vcmask 64512
  %s415 = scalar_lea.vmem %s1, 136
  %416 = vst.msk [vmem:[%s415] ss:$16 sm:$0x3] %vm414, %v413
  %s417 = scalar_lea.vmem %s1, 136
  %418 = vst.msk [vmem:[%s417] ss:$16 sm:$0xc] %vm414, %v413
  %s419 = scalar_lea.vmem %s1, 136
  %420 = vst.msk [vmem:[%s419] ss:$16 sm:$0x30] %vm414, %v413
  %s421 = scalar_lea.vmem %s1, 136
  %422 = vst.msk [vmem:[%s421] ss:$16 sm:$0xc0] %vm414, %v413
  %s423 = scalar_lea.vmem %s0, 16
  %v424 = vld [vmem:[%s423] sm:$0xff]
  %425 = vrot.lane.b32.xlu0 %v424, 64
  %v426 = vpop.permute.xlu0 %425
  %vm427 = vcmask 64512
  %s428 = scalar_lea.vmem %s1, 264
  %429 = vst.msk [vmem:[%s428] ss:$16 sm:$0x3] %vm427, %v426
  %s430 = scalar_lea.vmem %s1, 264
  %431 = vst.msk [vmem:[%s430] ss:$16 sm:$0xc] %vm427, %v426
  %s432 = scalar_lea.vmem %s1, 264
  %433 = vst.msk [vmem:[%s432] ss:$16 sm:$0x30] %vm427, %v426
  %s434 = scalar_lea.vmem %s1, 264
  %435 = vst.msk [vmem:[%s434] ss:$16 sm:$0xc0] %vm427, %v426
  %s436 = scalar_lea.vmem %s0, 24
  %v437 = vld [vmem:[%s436] sm:$0x7f]
  %438 = vrot.lane.b32.xlu0 %v437, 64
  %v439 = vpop.permute.xlu0 %438
  %vm440 = vcmask 64512
  %s441 = scalar_lea.vmem %s1, 392
  %442 = vst.msk [vmem:[%s441] ss:$16 sm:$0x3] %vm440, %v439
  %s443 = scalar_lea.vmem %s1, 392
  %444 = vst.msk [vmem:[%s443] ss:$16 sm:$0xc] %vm440, %v439
  %s445 = scalar_lea.vmem %s1, 392
  %446 = vst.msk [vmem:[%s445] ss:$16 sm:$0x30] %vm440, %v439
  %s447 = scalar_lea.vmem %s1, 482
  %448 = vst.msk [vmem:[%s447] sm:$0x40] %vm440, %v439
  %v449 = vld [vmem:[%s0] sm:$0xff]
  %450 = vrot.lane.b32.xlu0 %v449, 56
  %v451 = vpop.permute.xlu0 %450
  %vm452 = vcmask 64512
  %s453 = scalar_lea.vmem %s1, 9
  %454 = vst.msk [vmem:[%s453] ss:$16 sm:$0x3] %vm452, %v451
  %s455 = scalar_lea.vmem %s1, 9
  %456 = vst.msk [vmem:[%s455] ss:$16 sm:$0xc] %vm452, %v451
  %s457 = scalar_lea.vmem %s1, 9
  %458 = vst.msk [vmem:[%s457] ss:$16 sm:$0x30] %vm452, %v451
  %s459 = scalar_lea.vmem %s1, 9
  %460 = vst.msk [vmem:[%s459] ss:$16 sm:$0xc0] %vm452, %v451
  %s461 = scalar_lea.vmem %s0, 8
  %v462 = vld [vmem:[%s461] sm:$0xff]
  %463 = vrot.lane.b32.xlu0 %v462, 56
  %v464 = vpop.permute.xlu0 %463
  %vm465 = vcmask 64512
  %s466 = scalar_lea.vmem %s1, 137
  %467 = vst.msk [vmem:[%s466] ss:$16 sm:$0x3] %vm465, %v464
  %s468 = scalar_lea.vmem %s1, 137
  %469 = vst.msk [vmem:[%s468] ss:$16 sm:$0xc] %vm465, %v464
  %s470 = scalar_lea.vmem %s1, 137
  %471 = vst.msk [vmem:[%s470] ss:$16 sm:$0x30] %vm465, %v464
  %s472 = scalar_lea.vmem %s1, 137
  %473 = vst.msk [vmem:[%s472] ss:$16 sm:$0xc0] %vm465, %v464
  %s474 = scalar_lea.vmem %s0, 16
  %v475 = vld [vmem:[%s474] sm:$0xff]
  %476 = vrot.lane.b32.xlu0 %v475, 56
  %v477 = vpop.permute.xlu0 %476
  %vm478 = vcmask 64512
  %s479 = scalar_lea.vmem %s1, 265
  %480 = vst.msk [vmem:[%s479] ss:$16 sm:$0x3] %vm478, %v477
  %s481 = scalar_lea.vmem %s1, 265
  %482 = vst.msk [vmem:[%s481] ss:$16 sm:$0xc] %vm478, %v477
  %s483 = scalar_lea.vmem %s1, 265
  %484 = vst.msk [vmem:[%s483] ss:$16 sm:$0x30] %vm478, %v477
  %s485 = scalar_lea.vmem %s1, 265
  %486 = vst.msk [vmem:[%s485] ss:$16 sm:$0xc0] %vm478, %v477
  %s487 = scalar_lea.vmem %s0, 24
  %v488 = vld [vmem:[%s487] sm:$0x7f]
  %489 = vrot.lane.b32.xlu0 %v488, 56
  %v490 = vpop.permute.xlu0 %489
  %vm491 = vcmask 64512
  %s492 = scalar_lea.vmem %s1, 393
  %493 = vst.msk [vmem:[%s492] ss:$16 sm:$0x3] %vm491, %v490
  %s494 = scalar_lea.vmem %s1, 393
  %495 = vst.msk [vmem:[%s494] ss:$16 sm:$0xc] %vm491, %v490
  %s496 = scalar_lea.vmem %s1, 393
  %497 = vst.msk [vmem:[%s496] ss:$16 sm:$0x30] %vm491, %v490
  %s498 = scalar_lea.vmem %s1, 483
  %499 = vst.msk [vmem:[%s498] sm:$0x40] %vm491, %v490
  %v500 = vld [vmem:[%s0] sm:$0xff]
  %501 = vrot.lane.b32.xlu0 %v500, 48
  %v502 = vpop.permute.xlu0 %501
  %vm503 = vcmask 64512
  %s504 = scalar_lea.vmem %s1, 10
  %505 = vst.msk [vmem:[%s504] ss:$16 sm:$0x3] %vm503, %v502
  %s506 = scalar_lea.vmem %s1, 10
  %507 = vst.msk [vmem:[%s506] ss:$16 sm:$0xc] %vm503, %v502
  %s508 = scalar_lea.vmem %s1, 10
  %509 = vst.msk [vmem:[%s508] ss:$16 sm:$0x30] %vm503, %v502
  %s510 = scalar_lea.vmem %s1, 10
  %511 = vst.msk [vmem:[%s510] ss:$16 sm:$0xc0] %vm503, %v502
  %s512 = scalar_lea.vmem %s0, 8
  %v513 = vld [vmem:[%s512] sm:$0xff]
  %514 = vrot.lane.b32.xlu0 %v513, 48
  %v515 = vpop.permute.xlu0 %514
  %vm516 = vcmask 64512
  %s517 = scalar_lea.vmem %s1, 138
  %518 = vst.msk [vmem:[%s517] ss:$16 sm:$0x3] %vm516, %v515
  %s519 = scalar_lea.vmem %s1, 138
  %520 = vst.msk [vmem:[%s519] ss:$16 sm:$0xc] %vm516, %v515
  %s521 = scalar_lea.vmem %s1, 138
  %522 = vst.msk [vmem:[%s521] ss:$16 sm:$0x30] %vm516, %v515
  %s523 = scalar_lea.vmem %s1, 138
  %524 = vst.msk [vmem:[%s523] ss:$16 sm:$0xc0] %vm516, %v515
  %s525 = scalar_lea.vmem %s0, 16
  %v526 = vld [vmem:[%s525] sm:$0xff]
  %527 = vrot.lane.b32.xlu0 %v526, 48
  %v528 = vpop.permute.xlu0 %527
  %vm529 = vcmask 64512
  %s530 = scalar_lea.vmem %s1, 266
  %531 = vst.msk [vmem:[%s530] ss:$16 sm:$0x3] %vm529, %v528
  %s532 = scalar_lea.vmem %s1, 266
  %533 = vst.msk [vmem:[%s532] ss:$16 sm:$0xc] %vm529, %v528
  %s534 = scalar_lea.vmem %s1, 266
  %535 = vst.msk [vmem:[%s534] ss:$16 sm:$0x30] %vm529, %v528
  %s536 = scalar_lea.vmem %s1, 266
  %537 = vst.msk [vmem:[%s536] ss:$16 sm:$0xc0] %vm529, %v528
  %s538 = scalar_lea.vmem %s0, 24
  %v539 = vld [vmem:[%s538] sm:$0x7f]
  %540 = vrot.lane.b32.xlu0 %v539, 48
  %v541 = vpop.permute.xlu0 %540
  %vm542 = vcmask 64512
  %s543 = scalar_lea.vmem %s1, 394
  %544 = vst.msk [vmem:[%s543] ss:$16 sm:$0x3] %vm542, %v541
  %s545 = scalar_lea.vmem %s1, 394
  %546 = vst.msk [vmem:[%s545] ss:$16 sm:$0xc] %vm542, %v541
  %s547 = scalar_lea.vmem %s1, 394
  %548 = vst.msk [vmem:[%s547] ss:$16 sm:$0x30] %vm542, %v541
  %s549 = scalar_lea.vmem %s1, 484
  %550 = vst.msk [vmem:[%s549] sm:$0x40] %vm542, %v541
  %v551 = vld [vmem:[%s0] sm:$0xff]
  %552 = vrot.lane.b32.xlu0 %v551, 40
  %v553 = vpop.permute.xlu0 %552
  %vm554 = vcmask 64512
  %s555 = scalar_lea.vmem %s1, 11
  %556 = vst.msk [vmem:[%s555] ss:$16 sm:$0x3] %vm554, %v553
  %s557 = scalar_lea.vmem %s1, 11
  %558 = vst.msk [vmem:[%s557] ss:$16 sm:$0xc] %vm554, %v553
  %s559 = scalar_lea.vmem %s1, 11
  %560 = vst.msk [vmem:[%s559] ss:$16 sm:$0x30] %vm554, %v553
  %s561 = scalar_lea.vmem %s1, 11
  %562 = vst.msk [vmem:[%s561] ss:$16 sm:$0xc0] %vm554, %v553
  %s563 = scalar_lea.vmem %s0, 8
  %v564 = vld [vmem:[%s563] sm:$0xff]
  %565 = vrot.lane.b32.xlu0 %v564, 40
  %v566 = vpop.permute.xlu0 %565
  %vm567 = vcmask 64512
  %s568 = scalar_lea.vmem %s1, 139
  %569 = vst.msk [vmem:[%s568] ss:$16 sm:$0x3] %vm567, %v566
  %s570 = scalar_lea.vmem %s1, 139
  %571 = vst.msk [vmem:[%s570] ss:$16 sm:$0xc] %vm567, %v566
  %s572 = scalar_lea.vmem %s1, 139
  %573 = vst.msk [vmem:[%s572] ss:$16 sm:$0x30] %vm567, %v566
  %s574 = scalar_lea.vmem %s1, 139
  %575 = vst.msk [vmem:[%s574] ss:$16 sm:$0xc0] %vm567, %v566
  %s576 = scalar_lea.vmem %s0, 16
  %v577 = vld [vmem:[%s576] sm:$0xff]
  %578 = vrot.lane.b32.xlu0 %v577, 40
  %v579 = vpop.permute.xlu0 %578
  %vm580 = vcmask 64512
  %s581 = scalar_lea.vmem %s1, 267
  %582 = vst.msk [vmem:[%s581] ss:$16 sm:$0x3] %vm580, %v579
  %s583 = scalar_lea.vmem %s1, 267
  %584 = vst.msk [vmem:[%s583] ss:$16 sm:$0xc] %vm580, %v579
  %s585 = scalar_lea.vmem %s1, 267
  %586 = vst.msk [vmem:[%s585] ss:$16 sm:$0x30] %vm580, %v579
  %s587 = scalar_lea.vmem %s1, 267
  %588 = vst.msk [vmem:[%s587] ss:$16 sm:$0xc0] %vm580, %v579
  %s589 = scalar_lea.vmem %s0, 24
  %v590 = vld [vmem:[%s589] sm:$0x7f]
  %591 = vrot.lane.b32.xlu0 %v590, 40
  %v592 = vpop.permute.xlu0 %591
  %vm593 = vcmask 64512
  %s594 = scalar_lea.vmem %s1, 395
  %595 = vst.msk [vmem:[%s594] ss:$16 sm:$0x3] %vm593, %v592
  %s596 = scalar_lea.vmem %s1, 395
  %597 = vst.msk [vmem:[%s596] ss:$16 sm:$0xc] %vm593, %v592
  %s598 = scalar_lea.vmem %s1, 395
  %599 = vst.msk [vmem:[%s598] ss:$16 sm:$0x30] %vm593, %v592
  %s600 = scalar_lea.vmem %s1, 485
  %601 = vst.msk [vmem:[%s600] sm:$0x40] %vm593, %v592
  %v602 = vld [vmem:[%s0] sm:$0xff]
  %603 = vrot.lane.b32.xlu0 %v602, 32
  %v604 = vpop.permute.xlu0 %603
  %vm605 = vcmask 64512
  %s606 = scalar_lea.vmem %s1, 12
  %607 = vst.msk [vmem:[%s606] ss:$16 sm:$0x3] %vm605, %v604
  %s608 = scalar_lea.vmem %s1, 12
  %609 = vst.msk [vmem:[%s608] ss:$16 sm:$0xc] %vm605, %v604
  %s610 = scalar_lea.vmem %s1, 12
  %611 = vst.msk [vmem:[%s610] ss:$16 sm:$0x30] %vm605, %v604
  %s612 = scalar_lea.vmem %s1, 12
  %613 = vst.msk [vmem:[%s612] ss:$16 sm:$0xc0] %vm605, %v604
  %s614 = scalar_lea.vmem %s0, 8
  %v615 = vld [vmem:[%s614] sm:$0xff]
  %616 = vrot.lane.b32.xlu0 %v615, 32
  %v617 = vpop.permute.xlu0 %616
  %vm618 = vcmask 64512
  %s619 = scalar_lea.vmem %s1, 140
  %620 = vst.msk [vmem:[%s619] ss:$16 sm:$0x3] %vm618, %v617
  %s621 = scalar_lea.vmem %s1, 140
  %622 = vst.msk [vmem:[%s621] ss:$16 sm:$0xc] %vm618, %v617
  %s623 = scalar_lea.vmem %s1, 140
  %624 = vst.msk [vmem:[%s623] ss:$16 sm:$0x30] %vm618, %v617
  %s625 = scalar_lea.vmem %s1, 140
  %626 = vst.msk [vmem:[%s625] ss:$16 sm:$0xc0] %vm618, %v617
  %s627 = scalar_lea.vmem %s0, 16
  %v628 = vld [vmem:[%s627] sm:$0xff]
  %629 = vrot.lane.b32.xlu0 %v628, 32
  %v630 = vpop.permute.xlu0 %629
  %vm631 = vcmask 64512
  %s632 = scalar_lea.vmem %s1, 268
  %633 = vst.msk [vmem:[%s632] ss:$16 sm:$0x3] %vm631, %v630
  %s634 = scalar_lea.vmem %s1, 268
  %635 = vst.msk [vmem:[%s634] ss:$16 sm:$0xc] %vm631, %v630
  %s636 = scalar_lea.vmem %s1, 268
  %637 = vst.msk [vmem:[%s636] ss:$16 sm:$0x30] %vm631, %v630
  %s638 = scalar_lea.vmem %s1, 268
  %639 = vst.msk [vmem:[%s638] ss:$16 sm:$0xc0] %vm631, %v630
  %s640 = scalar_lea.vmem %s0, 24
  %v641 = vld [vmem:[%s640] sm:$0x7f]
  %642 = vrot.lane.b32.xlu0 %v641, 32
  %v643 = vpop.permute.xlu0 %642
  %vm644 = vcmask 64512
  %s645 = scalar_lea.vmem %s1, 396
  %646 = vst.msk [vmem:[%s645] ss:$16 sm:$0x3] %vm644, %v643
  %s647 = scalar_lea.vmem %s1, 396
  %648 = vst.msk [vmem:[%s647] ss:$16 sm:$0xc] %vm644, %v643
  %s649 = scalar_lea.vmem %s1, 396
  %650 = vst.msk [vmem:[%s649] ss:$16 sm:$0x30] %vm644, %v643
  %s651 = scalar_lea.vmem %s1, 486
  %652 = vst.msk [vmem:[%s651] sm:$0x40] %vm644, %v643
  %v653 = vld [vmem:[%s0] sm:$0xff]
  %654 = vrot.lane.b32.xlu0 %v653, 24
  %v655 = vpop.permute.xlu0 %654
  %vm656 = vcmask 64512
  %s657 = scalar_lea.vmem %s1, 13
  %658 = vst.msk [vmem:[%s657] ss:$16 sm:$0x3] %vm656, %v655
  %s659 = scalar_lea.vmem %s1, 13
  %660 = vst.msk [vmem:[%s659] ss:$16 sm:$0xc] %vm656, %v655
  %s661 = scalar_lea.vmem %s1, 13
  %662 = vst.msk [vmem:[%s661] ss:$16 sm:$0x30] %vm656, %v655
  %s663 = scalar_lea.vmem %s1, 13
  %664 = vst.msk [vmem:[%s663] ss:$16 sm:$0xc0] %vm656, %v655
  %s665 = scalar_lea.vmem %s0, 8
  %v666 = vld [vmem:[%s665] sm:$0xff]
  %667 = vrot.lane.b32.xlu0 %v666, 24
  %v668 = vpop.permute.xlu0 %667
  %vm669 = vcmask 64512
  %s670 = scalar_lea.vmem %s1, 141
  %671 = vst.msk [vmem:[%s670] ss:$16 sm:$0x3] %vm669, %v668
  %s672 = scalar_lea.vmem %s1, 141
  %673 = vst.msk [vmem:[%s672] ss:$16 sm:$0xc] %vm669, %v668
  %s674 = scalar_lea.vmem %s1, 141
  %675 = vst.msk [vmem:[%s674] ss:$16 sm:$0x30] %vm669, %v668
  %s676 = scalar_lea.vmem %s1, 141
  %677 = vst.msk [vmem:[%s676] ss:$16 sm:$0xc0] %vm669, %v668
  %s678 = scalar_lea.vmem %s0, 16
  %v679 = vld [vmem:[%s678] sm:$0xff]
  %680 = vrot.lane.b32.xlu0 %v679, 24
  %v681 = vpop.permute.xlu0 %680
  %vm682 = vcmask 64512
  %s683 = scalar_lea.vmem %s1, 269
  %684 = vst.msk [vmem:[%s683] ss:$16 sm:$0x3] %vm682, %v681
  %s685 = scalar_lea.vmem %s1, 269
  %686 = vst.msk [vmem:[%s685] ss:$16 sm:$0xc] %vm682, %v681
  %s687 = scalar_lea.vmem %s1, 269
  %688 = vst.msk [vmem:[%s687] ss:$16 sm:$0x30] %vm682, %v681
  %s689 = scalar_lea.vmem %s1, 269
  %690 = vst.msk [vmem:[%s689] ss:$16 sm:$0xc0] %vm682, %v681
  %s691 = scalar_lea.vmem %s0, 24
  %v692 = vld [vmem:[%s691] sm:$0x7f]
  %693 = vrot.lane.b32.xlu0 %v692, 24
  %v694 = vpop.permute.xlu0 %693
  %vm695 = vcmask 64512
  %s696 = scalar_lea.vmem %s1, 397
  %697 = vst.msk [vmem:[%s696] ss:$16 sm:$0x3] %vm695, %v694
  %s698 = scalar_lea.vmem %s1, 397
  %699 = vst.msk [vmem:[%s698] ss:$16 sm:$0xc] %vm695, %v694
  %s700 = scalar_lea.vmem %s1, 397
  %701 = vst.msk [vmem:[%s700] ss:$16 sm:$0x30] %vm695, %v694
  %s702 = scalar_lea.vmem %s1, 487
  %703 = vst.msk [vmem:[%s702] sm:$0x40] %vm695, %v694
  %v704 = vld [vmem:[%s0] sm:$0xff]
  %705 = vrot.lane.b32.xlu0 %v704, 16
  %v706 = vpop.permute.xlu0 %705
  %vm707 = vcmask 64512
  %s708 = scalar_lea.vmem %s1, 14
  %709 = vst.msk [vmem:[%s708] ss:$16 sm:$0x3] %vm707, %v706
  %s710 = scalar_lea.vmem %s1, 14
  %711 = vst.msk [vmem:[%s710] ss:$16 sm:$0xc] %vm707, %v706
  %s712 = scalar_lea.vmem %s1, 14
  %713 = vst.msk [vmem:[%s712] ss:$16 sm:$0x30] %vm707, %v706
  %s714 = scalar_lea.vmem %s1, 14
  %715 = vst.msk [vmem:[%s714] ss:$16 sm:$0xc0] %vm707, %v706
  %s716 = scalar_lea.vmem %s0, 8
  %v717 = vld [vmem:[%s716] sm:$0xff]
  %718 = vrot.lane.b32.xlu0 %v717, 16
  %v719 = vpop.permute.xlu0 %718
  %vm720 = vcmask 64512
  %s721 = scalar_lea.vmem %s1, 142
  %722 = vst.msk [vmem:[%s721] ss:$16 sm:$0x3] %vm720, %v719
  %s723 = scalar_lea.vmem %s1, 142
  %724 = vst.msk [vmem:[%s723] ss:$16 sm:$0xc] %vm720, %v719
  %s725 = scalar_lea.vmem %s1, 142
  %726 = vst.msk [vmem:[%s725] ss:$16 sm:$0x30] %vm720, %v719
  %s727 = scalar_lea.vmem %s1, 142
  %728 = vst.msk [vmem:[%s727] ss:$16 sm:$0xc0] %vm720, %v719
  %s729 = scalar_lea.vmem %s0, 16
  %v730 = vld [vmem:[%s729] sm:$0xff]
  %731 = vrot.lane.b32.xlu0 %v730, 16
  %v732 = vpop.permute.xlu0 %731
  %vm733 = vcmask 64512
  %s734 = scalar_lea.vmem %s1, 270
  %735 = vst.msk [vmem:[%s734] ss:$16 sm:$0x3] %vm733, %v732
  %s736 = scalar_lea.vmem %s1, 270
  %737 = vst.msk [vmem:[%s736] ss:$16 sm:$0xc] %vm733, %v732
  %s738 = scalar_lea.vmem %s1, 270
  %739 = vst.msk [vmem:[%s738] ss:$16 sm:$0x30] %vm733, %v732
  %s740 = scalar_lea.vmem %s1, 270
  %741 = vst.msk [vmem:[%s740] ss:$16 sm:$0xc0] %vm733, %v732
  %s742 = scalar_lea.vmem %s0, 24
  %v743 = vld [vmem:[%s742] sm:$0x7f]
  %744 = vrot.lane.b32.xlu0 %v743, 16
  %v745 = vpop.permute.xlu0 %744
  %vm746 = vcmask 64512
  %s747 = scalar_lea.vmem %s1, 398
  %748 = vst.msk [vmem:[%s747] ss:$16 sm:$0x3] %vm746, %v745
  %s749 = scalar_lea.vmem %s1, 398
  %750 = vst.msk [vmem:[%s749] ss:$16 sm:$0xc] %vm746, %v745
  %s751 = scalar_lea.vmem %s1, 398
  %752 = vst.msk [vmem:[%s751] ss:$16 sm:$0x30] %vm746, %v745
  %s753 = scalar_lea.vmem %s1, 488
  %754 = vst.msk [vmem:[%s753] sm:$0x40] %vm746, %v745
  %v755 = vld [vmem:[%s0] sm:$0xff]
  %756 = vrot.lane.b32.xlu0 %v755, 8
  %v757 = vpop.permute.xlu0 %756
  %vm758 = vcmask 64512
  %s759 = scalar_lea.vmem %s1, 15
  %760 = vst.msk [vmem:[%s759] ss:$16 sm:$0x3] %vm758, %v757
  %s761 = scalar_lea.vmem %s1, 15
  %762 = vst.msk [vmem:[%s761] ss:$16 sm:$0xc] %vm758, %v757
  %s763 = scalar_lea.vmem %s1, 15
  %764 = vst.msk [vmem:[%s763] ss:$16 sm:$0x30] %vm758, %v757
  %s765 = scalar_lea.vmem %s1, 15
  %766 = vst.msk [vmem:[%s765] ss:$16 sm:$0xc0] %vm758, %v757
  %s767 = scalar_lea.vmem %s0, 8
  %v768 = vld [vmem:[%s767] sm:$0xff]
  %769 = vrot.lane.b32.xlu0 %v768, 8
  %v770 = vpop.permute.xlu0 %769
  %vm771 = vcmask 64512
  %s772 = scalar_lea.vmem %s1, 143
  %773 = vst.msk [vmem:[%s772] ss:$16 sm:$0x3] %vm771, %v770
  %s774 = scalar_lea.vmem %s1, 143
  %775 = vst.msk [vmem:[%s774] ss:$16 sm:$0xc] %vm771, %v770
  %s776 = scalar_lea.vmem %s1, 143
  %777 = vst.msk [vmem:[%s776] ss:$16 sm:$0x30] %vm771, %v770
  %s778 = scalar_lea.vmem %s1, 143
  %779 = vst.msk [vmem:[%s778] ss:$16 sm:$0xc0] %vm771, %v770
  %s780 = scalar_lea.vmem %s0, 16
  %v781 = vld [vmem:[%s780] sm:$0xff]
  %782 = vrot.lane.b32.xlu0 %v781, 8
  %v783 = vpop.permute.xlu0 %782
  %vm784 = vcmask 64512
  %s785 = scalar_lea.vmem %s1, 271
  %786 = vst.msk [vmem:[%s785] ss:$16 sm:$0x3] %vm784, %v783
  %s787 = scalar_lea.vmem %s1, 271
  %788 = vst.msk [vmem:[%s787] ss:$16 sm:$0xc] %vm784, %v783
  %s789 = scalar_lea.vmem %s1, 271
  %790 = vst.msk [vmem:[%s789] ss:$16 sm:$0x30] %vm784, %v783
  %s791 = scalar_lea.vmem %s1, 271
  %792 = vst.msk [vmem:[%s791] ss:$16 sm:$0xc0] %vm784, %v783
  %s793 = scalar_lea.vmem %s0, 24
  %v794 = vld [vmem:[%s793] sm:$0x7f]
  %795 = vrot.lane.b32.xlu0 %v794, 8
  %v796 = vpop.permute.xlu0 %795
  %vm797 = vcmask 64512
  %s798 = scalar_lea.vmem %s1, 399
  %799 = vst.msk [vmem:[%s798] ss:$16 sm:$0x3] %vm797, %v796
  %s800 = scalar_lea.vmem %s1, 399
  %801 = vst.msk [vmem:[%s800] ss:$16 sm:$0xc] %vm797, %v796
  %s802 = scalar_lea.vmem %s1, 399
  %803 = vst.msk [vmem:[%s802] ss:$16 sm:$0x30] %vm797, %v796
  %s804 = scalar_lea.vmem %s1, 489
  %805 = vst.msk [vmem:[%s804] sm:$0x40] %vm797, %v796

// kernel: deepfm_forward.1
$region0: #{deepfm_forward.1}
  #allocation0 [shape = 'u32[]', space=smem, size = 0x4, offset = 0x4, fixed_abs, tag = 'smem constant byte address 0x4 - core index']
  #allocation1 [shape = 'u32[144,128]{1,0:T(1,128)}', space=vmem, size = 0x12000, scoped, tag = 'internal scratch']
  %s0 = inlined_call_operand.vmem [shape: f32[512,128], index: 0, kind: input, shape index: {}]
  %s1 = inlined_call_operand.vmem [shape: f32[512,1], index: 1, kind: input, shape index: {}]
  %s2 = inlined_call_operand.vmem [shape: f32[128,128], index: 2, kind: input, shape index: {}]
  %s3 = inlined_call_operand.vmem [shape: bf16[128,128], index: 3, kind: input, shape index: {}]
  %s4 = inlined_call_operand.vmem [shape: f32[1,128], index: 4, kind: input, shape index: {}]
  %s5 = inlined_call_operand.vmem [shape: bf16[128,128], index: 5, kind: input, shape index: {}]
  %s6 = inlined_call_operand.vmem [shape: f32[1,128], index: 6, kind: input, shape index: {}]
  %s7 = inlined_call_operand.vmem [shape: bf16[128,128], index: 7, kind: input, shape index: {}]
  %s8 = inlined_call_operand.vmem [shape: f32[1,128], index: 8, kind: input, shape index: {}]
  %s9 = inlined_call_operand.vmem [shape: f32[1,128], index: 9, kind: input, shape index: {}]
  %s10 = inlined_call_operand.vmem [shape: f32[512,1], index: 10, kind: output, shape index: {}]
  %s11 = sld [smem:[#allocation0]]
  $region73: #{deepfm_forward.1} parent=0
    _
  %s13 = ssub.s32 1, %s11
  %s14 = scalar_select 0, %s13, %s11
  loop: start=0, step=1, limit=4
  $region2: #{deepfm_forward.1} parent=0 // loop_pre_header
    _
  $region3: #{deepfm_forward.1} parent=0 // loop_header
    %s16 = sphi 0, %s20
    %p17 = scmp.ge.s32.totalorder %s16, 4
    %s26 = sphi 0, %s28
    %s29 = sphi 0, %s26
    %s30 = sphi 0, %s29
    %s46 = sphi 0, %s30
    %s52 = sphi 0, %s54
    %s55 = sphi 0, %s52
    %s56 = sphi 0, %s55
    %s72 = sphi 0, %s56
    %s76 = sphi 0, %s76
    %s78 = sphi 0, %s76
    %s79 = sphi 0, %s78
    %s93 = sphi 0, %s79
    %s97 = sphi 0, %s97
    %s99 = sphi 0, %s97
    %s100 = sphi 0, %s99
    %s114 = sphi 0, %s100
    %s118 = sphi 0, %s118
    %s120 = sphi 0, %s118
    %s121 = sphi 0, %s120
    %s135 = sphi 0, %s121
    %s139 = sphi 0, %s139
    %s141 = sphi 0, %s139
    %s142 = sphi 0, %s141
    %s156 = sphi 0, %s142
    %s160 = sphi 0, %s160
    %s162 = sphi 0, %s160
    %s163 = sphi 0, %s162
    %s177 = sphi 0, %s163
    %s181 = sphi 0, %s181
    %s183 = sphi 0, %s181
    %s184 = sphi 0, %s183
    %s198 = sphi 0, %s184
    %s202 = sphi 0, %s202
    %s204 = sphi 0, %s202
    %s205 = sphi 0, %s204
    %s219 = sphi 0, %s205
    %s223 = sphi 0, %s223
    %s225 = sphi 0, %s223
    %s226 = sphi 0, %s225
    %s240 = sphi 0, %s226
    %s246 = sphi 0, %s248
    %s249 = sphi 0, %s246
    %s250 = sphi 0, %s249
    %s266 = sphi 0, %s250
  $region4: #{deepfm_forward.1} parent=0 // loop_header_branch
    %19 = sbr.rel (%p17) target = $region8
  $region5: #{deepfm_forward.1} parent=0 // loop_body
    %s21 = ssub.s32 %s16, 1
    %s22 = ssub.s32 %s16, 2
    %s23 = sadd.s32 %s16, 1
    %s24 = ssub.s32 %s16, %s23
    %p25 = scmp.eq.s32.totalorder %s24, 0
    %s27 = sadd.s32 %s26, 1
    %s28 = scalar_select %p25, %s26, %s27
    %p31 = pneg %p25
    %p32 = scmp.eq.s32.totalorder %s16, 1
    %p33 = por %p31, %p32
    %p34 = scmp.ne.s32.totalorder %s26, %s29
    %p35 = scmp.eq.s32.totalorder %s16, 0
    %p36 = por %p34, %p35
    %p37 = scmp.ne.s32.totalorder %s26, %s29
    %p38 = scmp.eq.s32.totalorder %s21, 1
    %p39 = por %p37, %p38
    %p40 = scmp.ne.s32.totalorder %s29, %s30
    %p41 = scmp.eq.s32.totalorder %s21, 0
    %p42 = por %p40, %p41
    %p43 = scmp.ne.s32.totalorder %s29, %s30
    %p44 = scmp.eq.s32.totalorder %s22, 1
    %p45 = por %p43, %p44
    %p47 = scmp.ne.s32.totalorder %s30, %s46
    %p48 = scmp.eq.s32.totalorder %s22, 0
    %p49 = por %p47, %p48
    %s50 = ssub.s32 %s16, %s23
    %p51 = scmp.eq.s32.totalorder %s50, 0
    %s53 = sadd.s32 %s52, 1
    %s54 = scalar_select %p51, %s52, %s53
    %p57 = pneg %p51
    %p58 = scmp.eq.s32.totalorder %s16, 1
    %p59 = por %p57, %p58
    %p60 = scmp.ne.s32.totalorder %s52, %s55
    %p61 = scmp.eq.s32.totalorder %s16, 0
    %p62 = por %p60, %p61
    %p63 = scmp.ne.s32.totalorder %s52, %s55
    %p64 = scmp.eq.s32.totalorder %s21, 1
    %p65 = por %p63, %p64
    %p66 = scmp.ne.s32.totalorder %s55, %s56
    %p67 = scmp.eq.s32.totalorder %s21, 0
    %p68 = por %p66, %p67
    %p69 = scmp.ne.s32.totalorder %s55, %s56
    %p70 = scmp.eq.s32.totalorder %s22, 1
    %p71 = por %p69, %p70
    %p73 = scmp.ne.s32.totalorder %s56, %s72
    %p74 = scmp.eq.s32.totalorder %s22, 0
    %p75 = por %p73, %p74
    %s77 = sadd.s32 %s76, 1
    %p80 = scmp.eq.s32.totalorder %s16, 1
    %p81 = scmp.ne.s32.totalorder %s76, %s78
    %p82 = scmp.eq.s32.totalorder %s16, 0
    %p83 = por %p81, %p82
    %p84 = scmp.ne.s32.totalorder %s76, %s78
    %p85 = scmp.eq.s32.totalorder %s21, 1
    %p86 = por %p84, %p85
    %p87 = scmp.ne.s32.totalorder %s78, %s79
    %p88 = scmp.eq.s32.totalorder %s21, 0
    %p89 = por %p87, %p88
    %p90 = scmp.ne.s32.totalorder %s78, %s79
    %p91 = scmp.eq.s32.totalorder %s22, 1
    %p92 = por %p90, %p91
    %p94 = scmp.ne.s32.totalorder %s79, %s93
    %p95 = scmp.eq.s32.totalorder %s22, 0
    %p96 = por %p94, %p95
    %s98 = sadd.s32 %s97, 1
    %p101 = scmp.eq.s32.totalorder %s16, 1
    %p102 = scmp.ne.s32.totalorder %s97, %s99
    %p103 = scmp.eq.s32.totalorder %s16, 0
    %p104 = por %p102, %p103
    %p105 = scmp.ne.s32.totalorder %s97, %s99
    %p106 = scmp.eq.s32.totalorder %s21, 1
    %p107 = por %p105, %p106
    %p108 = scmp.ne.s32.totalorder %s99, %s100
    %p109 = scmp.eq.s32.totalorder %s21, 0
    %p110 = por %p108, %p109
    %p111 = scmp.ne.s32.totalorder %s99, %s100
    %p112 = scmp.eq.s32.totalorder %s22, 1
    %p113 = por %p111, %p112
    %p115 = scmp.ne.s32.totalorder %s100, %s114
    %p116 = scmp.eq.s32.totalorder %s22, 0
    %p117 = por %p115, %p116
    %s119 = sadd.s32 %s118, 1
    %p122 = scmp.eq.s32.totalorder %s16, 1
    %p123 = scmp.ne.s32.totalorder %s118, %s120
    %p124 = scmp.eq.s32.totalorder %s16, 0
    %p125 = por %p123, %p124
    %p126 = scmp.ne.s32.totalorder %s118, %s120
    %p127 = scmp.eq.s32.totalorder %s21, 1
    %p128 = por %p126, %p127
    %p129 = scmp.ne.s32.totalorder %s120, %s121
    %p130 = scmp.eq.s32.totalorder %s21, 0
    %p131 = por %p129, %p130
    %p132 = scmp.ne.s32.totalorder %s120, %s121
    %p133 = scmp.eq.s32.totalorder %s22, 1
    %p134 = por %p132, %p133
    %p136 = scmp.ne.s32.totalorder %s121, %s135
    %p137 = scmp.eq.s32.totalorder %s22, 0
    %p138 = por %p136, %p137
    %s140 = sadd.s32 %s139, 1
    %p143 = scmp.eq.s32.totalorder %s16, 1
    %p144 = scmp.ne.s32.totalorder %s139, %s141
    %p145 = scmp.eq.s32.totalorder %s16, 0
    %p146 = por %p144, %p145
    %p147 = scmp.ne.s32.totalorder %s139, %s141
    %p148 = scmp.eq.s32.totalorder %s21, 1
    %p149 = por %p147, %p148
    %p150 = scmp.ne.s32.totalorder %s141, %s142
    %p151 = scmp.eq.s32.totalorder %s21, 0
    %p152 = por %p150, %p151
    %p153 = scmp.ne.s32.totalorder %s141, %s142
    %p154 = scmp.eq.s32.totalorder %s22, 1
    %p155 = por %p153, %p154
    %p157 = scmp.ne.s32.totalorder %s142, %s156
    %p158 = scmp.eq.s32.totalorder %s22, 0
    %p159 = por %p157, %p158
    %s161 = sadd.s32 %s160, 1
    %p164 = scmp.eq.s32.totalorder %s16, 1
    %p165 = scmp.ne.s32.totalorder %s160, %s162
    %p166 = scmp.eq.s32.totalorder %s16, 0
    %p167 = por %p165, %p166
    %p168 = scmp.ne.s32.totalorder %s160, %s162
    %p169 = scmp.eq.s32.totalorder %s21, 1
    %p170 = por %p168, %p169
    %p171 = scmp.ne.s32.totalorder %s162, %s163
    %p172 = scmp.eq.s32.totalorder %s21, 0
    %p173 = por %p171, %p172
    %p174 = scmp.ne.s32.totalorder %s162, %s163
    %p175 = scmp.eq.s32.totalorder %s22, 1
    %p176 = por %p174, %p175
    %p178 = scmp.ne.s32.totalorder %s163, %s177
    %p179 = scmp.eq.s32.totalorder %s22, 0
    %p180 = por %p178, %p179
    %s182 = sadd.s32 %s181, 1
    %p185 = scmp.eq.s32.totalorder %s16, 1
    %p186 = scmp.ne.s32.totalorder %s181, %s183
    %p187 = scmp.eq.s32.totalorder %s16, 0
    %p188 = por %p186, %p187
    %p189 = scmp.ne.s32.totalorder %s181, %s183
    %p190 = scmp.eq.s32.totalorder %s21, 1
    %p191 = por %p189, %p190
    %p192 = scmp.ne.s32.totalorder %s183, %s184
    %p193 = scmp.eq.s32.totalorder %s21, 0
    %p194 = por %p192, %p193
    %p195 = scmp.ne.s32.totalorder %s183, %s184
    %p196 = scmp.eq.s32.totalorder %s22, 1
    %p197 = por %p195, %p196
    %p199 = scmp.ne.s32.totalorder %s184, %s198
    %p200 = scmp.eq.s32.totalorder %s22, 0
    %p201 = por %p199, %p200
    %s203 = sadd.s32 %s202, 1
    %p206 = scmp.eq.s32.totalorder %s16, 1
    %p207 = scmp.ne.s32.totalorder %s202, %s204
    %p208 = scmp.eq.s32.totalorder %s16, 0
    %p209 = por %p207, %p208
    %p210 = scmp.ne.s32.totalorder %s202, %s204
    %p211 = scmp.eq.s32.totalorder %s21, 1
    %p212 = por %p210, %p211
    %p213 = scmp.ne.s32.totalorder %s204, %s205
    %p214 = scmp.eq.s32.totalorder %s21, 0
    %p215 = por %p213, %p214
    %p216 = scmp.ne.s32.totalorder %s204, %s205
    %p217 = scmp.eq.s32.totalorder %s22, 1
    %p218 = por %p216, %p217
    %p220 = scmp.ne.s32.totalorder %s205, %s219
    %p221 = scmp.eq.s32.totalorder %s22, 0
    %p222 = por %p220, %p221
    %s224 = sadd.s32 %s223, 1
    %p227 = scmp.eq.s32.totalorder %s16, 1
    %p228 = scmp.ne.s32.totalorder %s223, %s225
    %p229 = scmp.eq.s32.totalorder %s16, 0
    %p230 = por %p228, %p229
    %p231 = scmp.ne.s32.totalorder %s223, %s225
    %p232 = scmp.eq.s32.totalorder %s21, 1
    %p233 = por %p231, %p232
    %p234 = scmp.ne.s32.totalorder %s225, %s226
    %p235 = scmp.eq.s32.totalorder %s21, 0
    %p236 = por %p234, %p235
    %p237 = scmp.ne.s32.totalorder %s225, %s226
    %p238 = scmp.eq.s32.totalorder %s22, 1
    %p239 = por %p237, %p238
    %p241 = scmp.ne.s32.totalorder %s226, %s240
    %p242 = scmp.eq.s32.totalorder %s22, 0
    %p243 = por %p241, %p242
    %s244 = ssub.s32 %s16, %s23
    %p245 = scmp.eq.s32.totalorder %s244, 0
    %s247 = sadd.s32 %s246, 1
    %s248 = scalar_select %p245, %s246, %s247
    %p251 = pneg %p245
    %p252 = scmp.eq.s32.totalorder %s16, 1
    %p253 = por %p251, %p252
    %p254 = scmp.ne.s32.totalorder %s246, %s249
    %p255 = scmp.eq.s32.totalorder %s16, 0
    %p256 = por %p254, %p255
    %p257 = scmp.ne.s32.totalorder %s246, %s249
    %p258 = scmp.eq.s32.totalorder %s21, 1
    %p259 = por %p257, %p258
    %p260 = scmp.ne.s32.totalorder %s249, %s250
    %p261 = scmp.eq.s32.totalorder %s21, 0
    %p262 = por %p260, %p261
    %p263 = scmp.ne.s32.totalorder %s249, %s250
    %p264 = scmp.eq.s32.totalorder %s22, 1
    %p265 = por %p263, %p264
    %p267 = scmp.ne.s32.totalorder %s250, %s266
    %p268 = scmp.eq.s32.totalorder %s22, 0
    %p269 = por %p267, %p268
    %p270 = scmp.le.s32.totalorder 1, %s16
    %p271 = scmp.lt.s32.totalorder %s16, 3
    %p272 = pnand %p270, %p271
    %p273 = pneg %p272
    // Predicated region
    $region9: #{deepfm_forward.1} parent=5 // pred_check
      _
    $region10: #{deepfm_forward.1} parent=5 // pred_check_branch
      %275 = sbr.rel (%p272) target = $region12
    $region11: #{deepfm_forward.1} parent=5 // pred_region
      %s276 = ssub.s32 %s16, 1
      // Predicated region
      $region13: #{deepfm_forward.1} parent=11 // pred_check
        %p277 = pneg %p89
      $region14: #{deepfm_forward.1} parent=11 // pred_check_branch
        %279 = sbr.rel (%p277) target = $region16
      $region15: #{deepfm_forward.1} parent=11 // pred_region
        _
      $region16: #{deepfm_forward.1} parent=11 // pred_fallthru
        _
      // Predicated region
      $region17: #{deepfm_forward.1} parent=11 // pred_check
        %p280 = pneg %p110
      $region18: #{deepfm_forward.1} parent=11 // pred_check_branch
        %282 = sbr.rel (%p280) target = $region20
      $region19: #{deepfm_forward.1} parent=11 // pred_region
        _
      $region20: #{deepfm_forward.1} parent=11 // pred_fallthru
        _
      // Predicated region
      $region21: #{deepfm_forward.1} parent=11 // pred_check
        %p283 = pneg %p131
      $region22: #{deepfm_forward.1} parent=11 // pred_check_branch
        %285 = sbr.rel (%p283) target = $region24
      $region23: #{deepfm_forward.1} parent=11 // pred_region
        _
      $region24: #{deepfm_forward.1} parent=11 // pred_fallthru
        _
      // Predicated region
      $region25: #{deepfm_forward.1} parent=11 // pred_check
        %p286 = pneg %p152
      $region26: #{deepfm_forward.1} parent=11 // pred_check_branch
        %288 = sbr.rel (%p286) target = $region28
      $region27: #{deepfm_forward.1} parent=11 // pred_region
        _
      $region28: #{deepfm_forward.1} parent=11 // pred_fallthru
        _
      // Predicated region
      $region29: #{deepfm_forward.1} parent=11 // pred_check
        %p289 = pneg %p173
      $region30: #{deepfm_forward.1} parent=11 // pred_check_branch
        %291 = sbr.rel (%p289) target = $region32
      $region31: #{deepfm_forward.1} parent=11 // pred_region
        _
      $region32: #{deepfm_forward.1} parent=11 // pred_fallthru
        _
      // Predicated region
      $region33: #{deepfm_forward.1} parent=11 // pred_check
        %p292 = pneg %p194
      $region34: #{deepfm_forward.1} parent=11 // pred_check_branch
        %294 = sbr.rel (%p292) target = $region36
      $region35: #{deepfm_forward.1} parent=11 // pred_region
        _
      $region36: #{deepfm_forward.1} parent=11 // pred_fallthru
        _
      // Predicated region
      $region37: #{deepfm_forward.1} parent=11 // pred_check
        %p295 = pneg %p215
      $region38: #{deepfm_forward.1} parent=11 // pred_check_branch
        %297 = sbr.rel (%p295) target = $region40
      $region39: #{deepfm_forward.1} parent=11 // pred_region
        _
      $region40: #{deepfm_forward.1} parent=11 // pred_fallthru
        _
      // Predicated region
      $region41: #{deepfm_forward.1} parent=11 // pred_check
        %p298 = pneg %p236
      $region42: #{deepfm_forward.1} parent=11 // pred_check_branch
        %300 = sbr.rel (%p298) target = $region44
      $region43: #{deepfm_forward.1} parent=11 // pred_region
        _
      $region44: #{deepfm_forward.1} parent=11 // pred_fallthru
        _
    $region12: #{deepfm_forward.1} parent=5 // pred_fallthru
      _
    %p301 = scmp.lt.s32.totalorder %s16, 2
    // Predicated region
    $region45: #{deepfm_forward.1} parent=5 // pred_check
      %p302 = pneg %p301
    $region46: #{deepfm_forward.1} parent=5 // pred_check_branch
      %304 = sbr.rel (%p302) target = $region48
    $region47: #{deepfm_forward.1} parent=5 // pred_region
      // Predicated region
      $region49: #{deepfm_forward.1} parent=47 // pred_check
        %p305 = pneg %p36
      $region50: #{deepfm_forward.1} parent=47 // pred_check_branch
        %307 = sbr.rel (%p305) target = $region52
      $region51: #{deepfm_forward.1} parent=47 // pred_region
        %s308 = smul.u32 32, %s16
        %p309 = scmp.lt.s32.totalorder %s308, 63
        %s310 = scalar_select %p309, %s308, 63
        %s311 = smul.addr %s310, 8
        %s312 = scalar_lea.vmem %s0, %s311
        %s313 = smul.u32 32, %s16
      $region52: #{deepfm_forward.1} parent=47 // pred_fallthru
        _
      // Predicated region
      $region53: #{deepfm_forward.1} parent=47 // pred_check
        %p314 = pneg %p62
      $region54: #{deepfm_forward.1} parent=47 // pred_check_branch
        %316 = sbr.rel (%p314) target = $region56
      $region55: #{deepfm_forward.1} parent=47 // pred_region
        %s317 = smul.u32 32, %s16
        %p318 = scmp.lt.s32.totalorder %s317, 63
        %s319 = scalar_select %p318, %s317, 63
        %s320 = smul.addr %s319, 8
        %s321 = scalar_lea.vmem %s1, %s320
        %s322 = smul.u32 32, %s16
      $region56: #{deepfm_forward.1} parent=47 // pred_fallthru
        _
    $region48: #{deepfm_forward.1} parent=5 // pred_fallthru
      _
    %p323 = scmp.le.s32.totalorder 1, %s16
    %p324 = scmp.lt.s32.totalorder %s16, 3
    %p325 = pnand %p323, %p324
    %p326 = pneg %p325
    // Predicated region
    $region57: #{deepfm_forward.1} parent=5 // pred_check
      _
    $region58: #{deepfm_forward.1} parent=5 // pred_check_branch
      %328 = sbr.rel (%p325) target = $region60
    $region59: #{deepfm_forward.1} parent=5 // pred_region
      %s329 = ssub.s32 %s16, 1
      %s330 = smul.u32 32, %s21
      %p331 = scmp.lt.s32.totalorder %s330, 63
      %s332 = scalar_select %p331, %s330, 63
      %s333 = smul.addr %s332, 8
      %s334 = scalar_lea.vmem %s0, %s333
      %p335 = pneg %p42
      %p336 = pneg %p39
      %s337 = smul.u32 32, %s21
      %p338 = scmp.lt.s32.totalorder %s337, 63
      %s339 = scalar_select %p338, %s337, 63
      %s340 = smul.addr %s339, 8
      %s341 = scalar_lea.vmem %s1, %s340
      %p342 = pneg %p68
      %p343 = pneg %p65
      %p344 = pneg %p89
      %p345 = pneg %p86
      %p346 = pneg %p110
      %p347 = pneg %p107
      %p348 = pneg %p131
      %p349 = pneg %p128
      %p350 = pneg %p152
      %p351 = pneg %p149
      %p352 = pneg %p173
      %p353 = pneg %p170
      %p354 = pneg %p194
      %p355 = pneg %p191
      %p356 = pneg %p215
      %p357 = pneg %p212
      %p358 = pneg %p236
      %p359 = pneg %p233
      %p360 = pneg %p262
      %p361 = pneg %p259
      %s362 = smul.u32 32, %s21
      %p363 = scmp.lt.s32.totalorder %s362, 63
      %s364 = scalar_select %p363, %s362, 63
      %s365 = smul.addr %s364, 8
      %s366 = scalar_lea.vmem %s10, %s365
      %s367 = smul.u32 32, %s21
      %p368 = scmp.lt.s32.totalorder %s367, 63
      %s369 = scalar_select %p368, %s367, 63
      %s370 = smul.addr %s369, 8
      %s371 = scalar_lea.vmem %s0, %s370
      %s372 = smul.u32 32, %s21
      %s373 = smul.u32 32, %s21
      %p374 = scmp.lt.s32.totalorder %s373, 63
      %s375 = scalar_select %p374, %s373, 63
      %s376 = smul.addr %s375, 8
      %s377 = scalar_lea.vmem %s1, %s376
      %s378 = smul.u32 32, %s21
      %s379 = smul.u32 32, %s21
      %p380 = scmp.lt.s32.totalorder %s379, 63
      %s381 = scalar_select %p380, %s379, 63
      %s382 = smul.addr %s381, 8
      %s383 = scalar_lea.vmem %s10, %s382
      %s384 = smul.u32 32, %s21
      %v386 = vld [vmem:[%s371] sm:$0xff]
      %v387 = vld [vmem:[%s371 + $0x8] sm:$0xff]
      %v388 = vld [vmem:[%s371 + $0x10] sm:$0xff]
      %v389 = vld [vmem:[%s371 + $0x18] sm:$0xff]
      %v390 = vld [vmem:[%s371 + $0x20] sm:$0xff]
      %v391 = vld [vmem:[%s371 + $0x28] sm:$0xff]
      %v392 = vld [vmem:[%s371 + $0x30] sm:$0xff]
      %v393 = vld [vmem:[%s371 + $0x38] sm:$0xff]
      %v394 = vld [vmem:[%s371 + $0x40] sm:$0xff]
      %v395 = vld [vmem:[%s371 + $0x48] sm:$0xff]
      %v396 = vld [vmem:[%s371 + $0x50] sm:$0xff]
      %v397 = vld [vmem:[%s371 + $0x58] sm:$0xff]
      %v398 = vld [vmem:[%s371 + $0x60] sm:$0xff]
      %v399 = vld [vmem:[%s371 + $0x68] sm:$0xff]
      %v400 = vld [vmem:[%s371 + $0x70] sm:$0xff]
      %v401 = vld [vmem:[%s371 + $0x78] sm:$0xff]
      %v402 = vld [vmem:[%s371 + $0x80] sm:$0xff]
      %v403 = vld [vmem:[%s371 + $0x88] sm:$0xff]
      %v404 = vld [vmem:[%s371 + $0x90] sm:$0xff]
      %v405 = vld [vmem:[%s371 + $0x98] sm:$0xff]
      %v406 = vld [vmem:[%s371 + $0xa0] sm:$0xff]
      %v407 = vld [vmem:[%s371 + $0xa8] sm:$0xff]
      %v408 = vld [vmem:[%s371 + $0xb0] sm:$0xff]
      %v409 = vld [vmem:[%s371 + $0xb8] sm:$0xff]
      %v410 = vld [vmem:[%s371 + $0xc0] sm:$0xff]
      %v411 = vld [vmem:[%s371 + $0xc8] sm:$0xff]
      %v412 = vld [vmem:[%s371 + $0xd0] sm:$0xff]
      %v413 = vld [vmem:[%s371 + $0xd8] sm:$0xff]
      %v414 = vld [vmem:[%s371 + $0xe0] sm:$0xff]
      %v415 = vld [vmem:[%s371 + $0xe8] sm:$0xff]
      %v416 = vld [vmem:[%s371 + $0xf0] sm:$0xff]
      %v417 = vld [vmem:[%s371 + $0xf8] sm:$0xff]
      %v418 = vld [vmem:[%s2] sm:$0xff]
      %v419 = vld [vmem:[%s2 + $0x8] sm:$0xff]
      %v420 = vld [vmem:[%s2 + $0x10] sm:$0xff]
      %v421 = vld [vmem:[%s2 + $0x18] sm:$0xff]
      %v422 = vld [vmem:[%s2 + $0x20] sm:$0xff]
      %v423 = vld [vmem:[%s2 + $0x28] sm:$0xff]
      %v424 = vld [vmem:[%s2 + $0x30] sm:$0xff]
      %v425 = vld [vmem:[%s2 + $0x38] sm:$0xff]
      %v426 = vld [vmem:[%s2 + $0x40] sm:$0xff]
      %v427 = vld [vmem:[%s2 + $0x48] sm:$0xff]
      %v428 = vld [vmem:[%s2 + $0x50] sm:$0xff]
      %v429 = vld [vmem:[%s2 + $0x58] sm:$0xff]
      %v430 = vld [vmem:[%s2 + $0x60] sm:$0xff]
      %v431 = vld [vmem:[%s2 + $0x68] sm:$0xff]
      %v432 = vld [vmem:[%s2 + $0x70] sm:$0xff]
      %v433 = vld [vmem:[%s2 + $0x78] sm:$0xff]
      %434 = vmatprep.subr.mxu0 0.0
      %435 = vmatpush1.msra.mxu0 %v418
      %436 = vmatprep.subr.mxu0 0.0
      %437 = vmatpush1.msra.mxu0 %v419
      %438 = vmatprep.subr.mxu0 0.0
      %439 = vmatpush1.msra.mxu0 %v420
      %440 = vmatprep.subr.mxu0 0.0
      %441 = vmatpush1.msra.mxu0 %v421
      %442 = vmatprep.subr.mxu0 0.0
      %443 = vmatpush1.msra.mxu0 %v422
      %444 = vmatprep.subr.mxu0 0.0
      %445 = vmatpush1.msra.mxu0 %v423
      %446 = vmatprep.subr.mxu0 0.0
      %447 = vmatpush1.msra.mxu0 %v424
      %448 = vmatprep.subr.mxu0 0.0
      %449 = vmatpush1.msra.mxu0 %v425
      %450 = vmatprep.subr.mxu0 0.0
      %451 = vmatpush1.msra.mxu0 %v426
      %452 = vmatprep.subr.mxu0 0.0
      %453 = vmatpush1.msra.mxu0 %v427
      %454 = vmatprep.subr.mxu0 0.0
      %455 = vmatpush1.msra.mxu0 %v428
      %456 = vmatprep.subr.mxu0 0.0
      %457 = vmatpush1.msra.mxu0 %v429
      %458 = vmatprep.subr.mxu0 0.0
      %459 = vmatpush1.msra.mxu0 %v430
      %460 = vmatprep.subr.mxu0 0.0
      %461 = vmatpush1.msra.mxu0 %v431
      %462 = vmatprep.subr.mxu0 0.0
      %463 = vmatpush1.msra.mxu0 %v432
      %464 = vmatprep.subr.mxu0 0.0
      %465 = vmatpush1.msra.mxu0 %v433
      %466 = vmatprep.subr.mxu0 0.0
      %467 = vmatpush1.msra.mxu0 0.0
      %468 = vmatprep.subr.mxu0 0.0
      %469 = vmatpush1.msra.mxu0 0.0
      %470 = vmatprep.subr.mxu0 0.0
      %471 = vmatpush1.msra.mxu0 0.0
      %472 = vmatprep.subr.mxu0 0.0
      %473 = vmatpush1.msra.mxu0 0.0
      %474 = vmatprep.subr.mxu0 0.0
      %475 = vmatpush1.msra.mxu0 0.0
      %476 = vmatprep.subr.mxu0 0.0
      %477 = vmatpush1.msra.mxu0 0.0
      %478 = vmatprep.subr.mxu0 0.0
      %479 = vmatpush1.msra.mxu0 0.0
      %480 = vmatprep.subr.mxu0 0.0
      %481 = vmatpush1.msra.mxu0 0.0
      %482 = vmatprep.subr.mxu0 0.0
      %483 = vmatpush1.msra.mxu0 0.0
      %484 = vmatprep.subr.mxu0 0.0
      %485 = vmatpush1.msra.mxu0 0.0
      %486 = vmatprep.subr.mxu0 0.0
      %487 = vmatpush1.msra.mxu0 0.0
      %488 = vmatprep.subr.mxu0 0.0
      %489 = vmatpush1.msra.mxu0 0.0
      %490 = vmatprep.subr.mxu0 0.0
      %491 = vmatpush1.msra.mxu0 0.0
      %492 = vmatprep.subr.mxu0 0.0
      %493 = vmatpush1.msra.mxu0 0.0
      %494 = vmatprep.subr.mxu0 0.0
      %495 = vmatpush1.msra.mxu0 0.0
      %496 = vmatprep.subr.mxu0 0.0
      %497 = vmatpush1.msra.mxu0 0.0
      %498 = vmatprep.mubr.f32.mxu0 0.0
      %499 = vmatmul.mubr.f32.gmra.mrb[0].mxu0 %v386
      %v500 = vpop.f32.mrb[0].mxu0
      %v501 = vadd.f32 0.0, %v500
      %v502 = vpop.f32.mrb[0].mxu0
      %503 = vmatprep.mubr.f32.mxu0 0.0
      %504 = vmatmul.mubr.f32.gmra.mrb[0].mxu0 %v387
      %v505 = vpop.f32.mrb[0].mxu0
      %v506 = vadd.f32 0.0, %v505
      %v507 = vpop.f32.mrb[0].mxu0
      %508 = vmatprep.mubr.f32.mxu0 0.0
      %509 = vmatmul.mubr.f32.gmra.mrb[0].mxu0 %v388
      %v510 = vpop.f32.mrb[0].mxu0
      %v511 = vadd.f32 0.0, %v510
      %v512 = vpop.f32.mrb[0].mxu0
      %513 = vmatprep.mubr.f32.mxu0 0.0
      %514 = vmatmul.mubr.f32.gmra.mrb[0].mxu0 %v389
      %v515 = vpop.f32.mrb[0].mxu0
      %v516 = vadd.f32 0.0, %v515
      %v517 = vpop.f32.mrb[0].mxu0
      %518 = vmatprep.mubr.f32.mxu0 0.0
      %519 = vmatmul.mubr.f32.gmra.mrb[0].mxu0 %v390
      %v520 = vpop.f32.mrb[0].mxu0
      %v521 = vadd.f32 0.0, %v520
      %v522 = vpop.f32.mrb[0].mxu0
      %523 = vmatprep.mubr.f32.mxu0 0.0
      %524 = vmatmul.mubr.f32.gmra.mrb[0].mxu0 %v391
      %v525 = vpop.f32.mrb[0].mxu0
      %v526 = vadd.f32 0.0, %v525
      %v527 = vpop.f32.mrb[0].mxu0
      %528 = vmatprep.mubr.f32.mxu0 0.0
      %529 = vmatmul.mubr.f32.gmra.mrb[0].mxu0 %v392
      %v530 = vpop.f32.mrb[0].mxu0
      %v531 = vadd.f32 0.0, %v530
      %v532 = vpop.f32.mrb[0].mxu0
      %533 = vmatprep.mubr.f32.mxu0 0.0
      %534 = vmatmul.mubr.f32.gmra.mrb[0].mxu0 %v393
      %v535 = vpop.f32.mrb[0].mxu0
      %v536 = vadd.f32 0.0, %v535
      %v537 = vpop.f32.mrb[0].mxu0
      %538 = vmatprep.mubr.f32.mxu0 0.0
      %539 = vmatmul.mubr.f32.gmra.mrb[0].mxu0 %v394
      %v540 = vpop.f32.mrb[0].mxu0
      %v541 = vadd.f32 0.0, %v540
      %v542 = vpop.f32.mrb[0].mxu0
      %543 = vmatprep.mubr.f32.mxu0 0.0
      %544 = vmatmul.mubr.f32.gmra.mrb[0].mxu0 %v395
      %v545 = vpop.f32.mrb[0].mxu0
      %v546 = vadd.f32 0.0, %v545
      %v547 = vpop.f32.mrb[0].mxu0
      %548 = vmatprep.mubr.f32.mxu0 0.0
      %549 = vmatmul.mubr.f32.gmra.mrb[0].mxu0 %v396
      %v550 = vpop.f32.mrb[0].mxu0
      %v551 = vadd.f32 0.0, %v550
      %v552 = vpop.f32.mrb[0].mxu0
      %553 = vmatprep.mubr.f32.mxu0 0.0
      %554 = vmatmul.mubr.f32.gmra.mrb[0].mxu0 %v397
      %v555 = vpop.f32.mrb[0].mxu0
      %v556 = vadd.f32 0.0, %v555
      %v557 = vpop.f32.mrb[0].mxu0
      %558 = vmatprep.mubr.f32.mxu0 0.0
      %559 = vmatmul.mubr.f32.gmra.mrb[0].mxu0 %v398
      %v560 = vpop.f32.mrb[0].mxu0
      %v561 = vadd.f32 0.0, %v560
      %v562 = vpop.f32.mrb[0].mxu0
      %563 = vmatprep.mubr.f32.mxu0 0.0
      %564 = vmatmul.mubr.f32.gmra.mrb[0].mxu0 %v399
      %v565 = vpop.f32.mrb[0].mxu0
      %v566 = vadd.f32 0.0, %v565
      %v567 = vpop.f32.mrb[0].mxu0
      %568 = vmatprep.mubr.f32.mxu0 0.0
      %569 = vmatmul.mubr.f32.gmra.mrb[0].mxu0 %v400
      %v570 = vpop.f32.mrb[0].mxu0
      %v571 = vadd.f32 0.0, %v570
      %v572 = vpop.f32.mrb[0].mxu0
      %573 = vmatprep.mubr.f32.mxu0 0.0
      %574 = vmatmul.mubr.f32.gmra.mrb[0].mxu0 %v401
      %v575 = vpop.f32.mrb[0].mxu0
      %v576 = vadd.f32 0.0, %v575
      %v577 = vpop.f32.mrb[0].mxu0
      %578 = vmatprep.mubr.f32.mxu0 0.0
      %579 = vmatmul.mubr.f32.gmra.mrb[0].mxu0 %v402
      %v580 = vpop.f32.mrb[0].mxu0
      %v581 = vadd.f32 0.0, %v580
      %v582 = vpop.f32.mrb[0].mxu0
      %583 = vmatprep.mubr.f32.mxu0 0.0
      %584 = vmatmul.mubr.f32.gmra.mrb[0].mxu0 %v403
      %v585 = vpop.f32.mrb[0].mxu0
      %v586 = vadd.f32 0.0, %v585
      %v587 = vpop.f32.mrb[0].mxu0
      %588 = vmatprep.mubr.f32.mxu0 0.0
      %589 = vmatmul.mubr.f32.gmra.mrb[0].mxu0 %v404
      %v590 = vpop.f32.mrb[0].mxu0
      %v591 = vadd.f32 0.0, %v590
      %v592 = vpop.f32.mrb[0].mxu0
      %593 = vmatprep.mubr.f32.mxu0 0.0
      %594 = vmatmul.mubr.f32.gmra.mrb[0].mxu0 %v405
      %v595 = vpop.f32.mrb[0].mxu0
      %v596 = vadd.f32 0.0, %v595
      %v597 = vpop.f32.mrb[0].mxu0
      %598 = vmatprep.mubr.f32.mxu0 0.0
      %599 = vmatmul.mubr.f32.gmra.mrb[0].mxu0 %v406
      %v600 = vpop.f32.mrb[0].mxu0
      %v601 = vadd.f32 0.0, %v600
      %v602 = vpop.f32.mrb[0].mxu0
      %603 = vmatprep.mubr.f32.mxu0 0.0
      %604 = vmatmul.mubr.f32.gmra.mrb[0].mxu0 %v407
      %v605 = vpop.f32.mrb[0].mxu0
      %v606 = vadd.f32 0.0, %v605
      %v607 = vpop.f32.mrb[0].mxu0
      %608 = vmatprep.mubr.f32.mxu0 0.0
      %609 = vmatmul.mubr.f32.gmra.mrb[0].mxu0 %v408
      %v610 = vpop.f32.mrb[0].mxu0
      %v611 = vadd.f32 0.0, %v610
      %v612 = vpop.f32.mrb[0].mxu0
      %613 = vmatprep.mubr.f32.mxu0 0.0
      %614 = vmatmul.mubr.f32.gmra.mrb[0].mxu0 %v409
      %v615 = vpop.f32.mrb[0].mxu0
      %v616 = vadd.f32 0.0, %v615
      %v617 = vpop.f32.mrb[0].mxu0
      %618 = vmatprep.mubr.f32.mxu0 0.0
      %619 = vmatmul.mubr.f32.gmra.mrb[0].mxu0 %v410
      %v620 = vpop.f32.mrb[0].mxu0
      %v621 = vadd.f32 0.0, %v620
      %v622 = vpop.f32.mrb[0].mxu0
      %623 = vmatprep.mubr.f32.mxu0 0.0
      %624 = vmatmul.mubr.f32.gmra.mrb[0].mxu0 %v411
      %v625 = vpop.f32.mrb[0].mxu0
      %v626 = vadd.f32 0.0, %v625
      %v627 = vpop.f32.mrb[0].mxu0
      %628 = vmatprep.mubr.f32.mxu0 0.0
      %629 = vmatmul.mubr.f32.gmra.mrb[0].mxu0 %v412
      %v630 = vpop.f32.mrb[0].mxu0
      %v631 = vadd.f32 0.0, %v630
      %v632 = vpop.f32.mrb[0].mxu0
      %633 = vmatprep.mubr.f32.mxu0 0.0
      %634 = vmatmul.mubr.f32.gmra.mrb[0].mxu0 %v413
      %v635 = vpop.f32.mrb[0].mxu0
      %v636 = vadd.f32 0.0, %v635
      %v637 = vpop.f32.mrb[0].mxu0
      %638 = vmatprep.mubr.f32.mxu0 0.0
      %639 = vmatmul.mubr.f32.gmra.mrb[0].mxu0 %v414
      %v640 = vpop.f32.mrb[0].mxu0
      %v641 = vadd.f32 0.0, %v640
      %v642 = vpop.f32.mrb[0].mxu0
      %643 = vmatprep.mubr.f32.mxu0 0.0
      %644 = vmatmul.mubr.f32.gmra.mrb[0].mxu0 %v415
      %v645 = vpop.f32.mrb[0].mxu0
      %v646 = vadd.f32 0.0, %v645
      %v647 = vpop.f32.mrb[0].mxu0
      %648 = vmatprep.mubr.f32.mxu0 0.0
      %649 = vmatmul.mubr.f32.gmra.mrb[0].mxu0 %v416
      %v650 = vpop.f32.mrb[0].mxu0
      %v651 = vadd.f32 0.0, %v650
      %v652 = vpop.f32.mrb[0].mxu0
      %653 = vmatprep.mubr.f32.mxu0 0.0
      %654 = vmatmul.mubr.f32.gmra.mrb[0].mxu0 %v417
      %v655 = vpop.f32.mrb[0].mxu0
      %v656 = vadd.f32 0.0, %v655
      %v657 = vpop.f32.mrb[0].mxu0
      %658 = vdwg.mxu0
      %v659 = vmul.f32 %v386, %v501
      %v660 = vmul.f32 %v387, %v506
      %v661 = vmul.f32 %v388, %v511
      %v662 = vmul.f32 %v389, %v516
      %v663 = vmul.f32 %v390, %v521
      %v664 = vmul.f32 %v391, %v526
      %v665 = vmul.f32 %v392, %v531
      %v666 = vmul.f32 %v393, %v536
      %v667 = vmul.f32 %v394, %v541
      %v668 = vmul.f32 %v395, %v546
      %v669 = vmul.f32 %v396, %v551
      %v670 = vmul.f32 %v397, %v556
      %v671 = vmul.f32 %v398, %v561
      %v672 = vmul.f32 %v399, %v566
      %v673 = vmul.f32 %v400, %v571
      %v674 = vmul.f32 %v401, %v576
      %v675 = vmul.f32 %v402, %v581
      %v676 = vmul.f32 %v403, %v586
      %v677 = vmul.f32 %v404, %v591
      %v678 = vmul.f32 %v405, %v596
      %v679 = vmul.f32 %v406, %v601
      %v680 = vmul.f32 %v407, %v606
      %v681 = vmul.f32 %v408, %v611
      %v682 = vmul.f32 %v409, %v616
      %v683 = vmul.f32 %v410, %v621
      %v684 = vmul.f32 %v411, %v626
      %v685 = vmul.f32 %v412, %v631
      %v686 = vmul.f32 %v413, %v636
      %v687 = vmul.f32 %v414, %v641
      %v688 = vmul.f32 %v415, %v646
      %v689 = vmul.f32 %v416, %v651
      %v690 = vmul.f32 %v417, %v656
      %691 = vadd.xlane.f32.xlu0 %v659
      %v692 = vpop.xlane.xlu0 %691
      %693 = vadd.xlane.f32.xlu0 %v660
      %v694 = vpop.xlane.xlu0 %693
      %695 = vadd.xlane.f32.xlu0 %v661
      %v696 = vpop.xlane.xlu0 %695
      %697 = vadd.xlane.f32.xlu0 %v662
      %v698 = vpop.xlane.xlu0 %697
      %699 = vadd.xlane.f32.xlu0 %v663
      %v700 = vpop.xlane.xlu0 %699
      %701 = vadd.xlane.f32.xlu0 %v664
      %v702 = vpop.xlane.xlu0 %701
      %703 = vadd.xlane.f32.xlu0 %v665
      %v704 = vpop.xlane.xlu0 %703
      %705 = vadd.xlane.f32.xlu0 %v666
      %v706 = vpop.xlane.xlu0 %705
      %707 = vadd.xlane.f32.xlu0 %v667
      %v708 = vpop.xlane.xlu0 %707
      %709 = vadd.xlane.f32.xlu0 %v668
      %v710 = vpop.xlane.xlu0 %709
      %711 = vadd.xlane.f32.xlu0 %v669
      %v712 = vpop.xlane.xlu0 %711
      %713 = vadd.xlane.f32.xlu0 %v670
      %v714 = vpop.xlane.xlu0 %713
      %715 = vadd.xlane.f32.xlu0 %v671
      %v716 = vpop.xlane.xlu0 %715
      %717 = vadd.xlane.f32.xlu0 %v672
      %v718 = vpop.xlane.xlu0 %717
      %719 = vadd.xlane.f32.xlu0 %v673
      %v720 = vpop.xlane.xlu0 %719
      %721 = vadd.xlane.f32.xlu0 %v674
      %v722 = vpop.xlane.xlu0 %721
      %723 = vadd.xlane.f32.xlu0 %v675
      %v724 = vpop.xlane.xlu0 %723
      %725 = vadd.xlane.f32.xlu0 %v676
      %v726 = vpop.xlane.xlu0 %725
      %727 = vadd.xlane.f32.xlu0 %v677
      %v728 = vpop.xlane.xlu0 %727
      %729 = vadd.xlane.f32.xlu0 %v678
      %v730 = vpop.xlane.xlu0 %729
      %731 = vadd.xlane.f32.xlu0 %v679
      %v732 = vpop.xlane.xlu0 %731
      %733 = vadd.xlane.f32.xlu0 %v680
      %v734 = vpop.xlane.xlu0 %733
      %735 = vadd.xlane.f32.xlu0 %v681
      %v736 = vpop.xlane.xlu0 %735
      %737 = vadd.xlane.f32.xlu0 %v682
      %v738 = vpop.xlane.xlu0 %737
      %739 = vadd.xlane.f32.xlu0 %v683
      %v740 = vpop.xlane.xlu0 %739
      %741 = vadd.xlane.f32.xlu0 %v684
      %v742 = vpop.xlane.xlu0 %741
      %743 = vadd.xlane.f32.xlu0 %v685
      %v744 = vpop.xlane.xlu0 %743
      %745 = vadd.xlane.f32.xlu0 %v686
      %v746 = vpop.xlane.xlu0 %745
      %747 = vadd.xlane.f32.xlu0 %v687
      %v748 = vpop.xlane.xlu0 %747
      %749 = vadd.xlane.f32.xlu0 %v688
      %v750 = vpop.xlane.xlu0 %749
      %751 = vadd.xlane.f32.xlu0 %v689
      %v752 = vpop.xlane.xlu0 %751
      %753 = vadd.xlane.f32.xlu0 %v690
      %v754 = vpop.xlane.xlu0 %753
      %v755 = vmul.f32 %v692, 0.03125
      %v756 = vmul.f32 %v694, 0.03125
      %v757 = vmul.f32 %v696, 0.03125
      %v758 = vmul.f32 %v698, 0.03125
      %v759 = vmul.f32 %v700, 0.03125
      %v760 = vmul.f32 %v702, 0.03125
      %v761 = vmul.f32 %v704, 0.03125
      %v762 = vmul.f32 %v706, 0.03125
      %v763 = vmul.f32 %v708, 0.03125
      %v764 = vmul.f32 %v710, 0.03125
      %v765 = vmul.f32 %v712, 0.03125
      %v766 = vmul.f32 %v714, 0.03125
      %v767 = vmul.f32 %v716, 0.03125
      %v768 = vmul.f32 %v718, 0.03125
      %v769 = vmul.f32 %v720, 0.03125
      %v770 = vmul.f32 %v722, 0.03125
      %v771 = vmul.f32 %v724, 0.03125
      %v772 = vmul.f32 %v726, 0.03125
      %v773 = vmul.f32 %v728, 0.03125
      %v774 = vmul.f32 %v730, 0.03125
      %v775 = vmul.f32 %v732, 0.03125
      %v776 = vmul.f32 %v734, 0.03125
      %v777 = vmul.f32 %v736, 0.03125
      %v778 = vmul.f32 %v738, 0.03125
      %v779 = vmul.f32 %v740, 0.03125
      %v780 = vmul.f32 %v742, 0.03125
      %v781 = vmul.f32 %v744, 0.03125
      %v782 = vmul.f32 %v746, 0.03125
      %v783 = vmul.f32 %v748, 0.03125
      %v784 = vmul.f32 %v750, 0.03125
      %v785 = vmul.f32 %v752, 0.03125
      %v786 = vmul.f32 %v754, 0.03125
      %v787 = vpack.c.bf16 %v387, %v386
      %v788 = vpack.c.bf16 %v389, %v388
      %v789 = vpack.c.bf16 %v391, %v390
      %v790 = vpack.c.bf16 %v393, %v392
      %v791 = vpack.c.bf16 %v395, %v394
      %v792 = vpack.c.bf16 %v397, %v396
      %v793 = vpack.c.bf16 %v399, %v398
      %v794 = vpack.c.bf16 %v401, %v400
      %v795 = vpack.c.bf16 %v403, %v402
      %v796 = vpack.c.bf16 %v405, %v404
      %v797 = vpack.c.bf16 %v407, %v406
      %v798 = vpack.c.bf16 %v409, %v408
      %v799 = vpack.c.bf16 %v411, %v410
      %v800 = vpack.c.bf16 %v413, %v412
      %v801 = vpack.c.bf16 %v415, %v414
      %v802 = vpack.c.bf16 %v417, %v416
      %v803 = vld [vmem:[%s3] sm:$0xf]
      %v804 = vld [vmem:[%s3 + $0x4] sm:$0xf]
      %v805 = vld [vmem:[%s3 + $0x8] sm:$0xf]
      %v806 = vld [vmem:[%s3 + $0xc] sm:$0xf]
      %v807 = vld [vmem:[%s3 + $0x10] sm:$0xf]
      %v808 = vld [vmem:[%s3 + $0x14] sm:$0xf]
      %v809 = vld [vmem:[%s3 + $0x18] sm:$0xf]
      %v810 = vld [vmem:[%s3 + $0x1c] sm:$0xf]
      %v811 = vld [vmem:[%s3 + $0x20] sm:$0xf]
      %v812 = vld [vmem:[%s3 + $0x24] sm:$0xf]
      %v813 = vld [vmem:[%s3 + $0x28] sm:$0xf]
      %v814 = vld [vmem:[%s3 + $0x2c] sm:$0xf]
      %v815 = vld [vmem:[%s3 + $0x30] sm:$0xf]
      %v816 = vld [vmem:[%s3 + $0x34] sm:$0xf]
      %v817 = vld [vmem:[%s3 + $0x38] sm:$0xf]
      %v818 = vld [vmem:[%s3 + $0x3c] sm:$0xf]
      %v819 = vld [vmem:[%s4] sm:$0x1]
      %v821 = vlaneseq
      %v822 = vshrl.u32 %v821, 7
      %v823 = vsub.s32 0, %v822
      %v824 = vrot.slane %v819, %v823
      %v842 = vunpack.c.l.b16 %v803
      %v843 = vunpack.c.l.b16 %v804
      %v844 = vunpack.c.l.b16 %v805
      %v845 = vunpack.c.l.b16 %v806
      %v846 = vunpack.c.l.b16 %v807
      %v847 = vunpack.c.l.b16 %v808
      %v848 = vunpack.c.l.b16 %v809
      %v849 = vunpack.c.l.b16 %v810
      %v850 = vunpack.c.l.b16 %v811
      %v851 = vunpack.c.l.b16 %v812
      %v852 = vunpack.c.l.b16 %v813
      %v853 = vunpack.c.l.b16 %v814
      %v854 = vunpack.c.l.b16 %v815
      %v855 = vunpack.c.l.b16 %v816
      %v856 = vunpack.c.l.b16 %v817
      %v857 = vunpack.c.l.b16 %v818
      %v858 = vpack.c.b16 %v843, %v842
      %v859 = vpack.c.b16 %v845, %v844
      %v860 = vpack.c.b16 %v847, %v846
      %v861 = vpack.c.b16 %v849, %v848
      %v862 = vpack.c.b16 %v851, %v850
      %v863 = vpack.c.b16 %v853, %v852
      %v864 = vpack.c.b16 %v855, %v854
      %v865 = vpack.c.b16 %v857, %v856
      %874 = vmatprep.subr.bf16.mxu0 0
      %875 = vmatpush1.bf16.msra.mxu0 %v858
      %876 = vmatprep.subr.bf16.mxu0 0
      %877 = vmatpush1.bf16.msra.mxu0 %v859
      %878 = vmatprep.subr.bf16.mxu0 0
      %879 = vmatpush1.bf16.msra.mxu0 %v860
      %880 = vmatprep.subr.bf16.mxu0 0
      %881 = vmatpush1.bf16.msra.mxu0 %v861
      %882 = vmatprep.subr.bf16.mxu0 0
      %883 = vmatpush1.bf16.msra.mxu0 %v862
      %884 = vmatprep.subr.bf16.mxu0 0
      %885 = vmatpush1.bf16.msra.mxu0 %v863
      %886 = vmatprep.subr.bf16.mxu0 0
      %887 = vmatpush1.bf16.msra.mxu0 %v864
      %888 = vmatprep.subr.bf16.mxu0 0
      %889 = vmatpush1.bf16.msra.mxu0 %v865
      %890 = vmatprep.subr.bf16.mxu0 0
      %891 = vmatpush1.bf16.msra.mxu0 0
      %892 = vmatprep.subr.bf16.mxu0 0
      %893 = vmatpush1.bf16.msra.mxu0 0
      %894 = vmatprep.subr.bf16.mxu0 0
      %895 = vmatpush1.bf16.msra.mxu0 0
      %896 = vmatprep.subr.bf16.mxu0 0
      %897 = vmatpush1.bf16.msra.mxu0 0
      %898 = vmatprep.subr.bf16.mxu0 0
      %899 = vmatpush1.bf16.msra.mxu0 0
      %900 = vmatprep.subr.bf16.mxu0 0
      %901 = vmatpush1.bf16.msra.mxu0 0
      %902 = vmatprep.subr.bf16.mxu0 0
      %903 = vmatpush1.bf16.msra.mxu0 0
      %904 = vmatprep.subr.bf16.mxu0 0
      %905 = vmatpush1.bf16.msra.mxu0 0
      %906 = vmatprep.mubr.bf16.mxu0 0
      %907 = vmatmul.mubr.bf16.gmra.mrb[0].mxu0 %v787
      %v908 = vpop.f32.mrb[0].mxu0
      %v909 = vadd.f32 %v824, %v908
      %v910 = vpop.f32.mrb[0].mxu0
      %v911 = vpop.f32.mrb[0].mxu0
      %v912 = vadd.f32 %v824, %v911
      %v913 = vpop.f32.mrb[0].mxu0
      %914 = vmatprep.mubr.bf16.mxu0 0
      %915 = vmatmul.mubr.bf16.gmra.mrb[0].mxu0 %v788
      %v916 = vpop.f32.mrb[0].mxu0
      %v917 = vadd.f32 %v824, %v916
      %v918 = vpop.f32.mrb[0].mxu0
      %v919 = vpop.f32.mrb[0].mxu0
      %v920 = vadd.f32 %v824, %v919
      %v921 = vpop.f32.mrb[0].mxu0
      %922 = vmatprep.mubr.bf16.mxu0 0
      %923 = vmatmul.mubr.bf16.gmra.mrb[0].mxu0 %v789
      %v924 = vpop.f32.mrb[0].mxu0
      %v925 = vadd.f32 %v824, %v924
      %v926 = vpop.f32.mrb[0].mxu0
      %v927 = vpop.f32.mrb[0].mxu0
      %v928 = vadd.f32 %v824, %v927
      %v929 = vpop.f32.mrb[0].mxu0
      %930 = vmatprep.mubr.bf16.mxu0 0
      %931 = vmatmul.mubr.bf16.gmra.mrb[0].mxu0 %v790
      %v932 = vpop.f32.mrb[0].mxu0
      %v933 = vadd.f32 %v824, %v932
      %v934 = vpop.f32.mrb[0].mxu0
      %v935 = vpop.f32.mrb[0].mxu0
      %v936 = vadd.f32 %v824, %v935
      %v937 = vpop.f32.mrb[0].mxu0
      %938 = vmatprep.mubr.bf16.mxu0 0
      %939 = vmatmul.mubr.bf16.gmra.mrb[0].mxu0 %v791
      %v940 = vpop.f32.mrb[0].mxu0
      %v941 = vadd.f32 %v824, %v940
      %v942 = vpop.f32.mrb[0].mxu0
      %v943 = vpop.f32.mrb[0].mxu0
      %v944 = vadd.f32 %v824, %v943
      %v945 = vpop.f32.mrb[0].mxu0
      %946 = vmatprep.mubr.bf16.mxu0 0
      %947 = vmatmul.mubr.bf16.gmra.mrb[0].mxu0 %v792
      %v948 = vpop.f32.mrb[0].mxu0
      %v949 = vadd.f32 %v824, %v948
      %v950 = vpop.f32.mrb[0].mxu0
      %v951 = vpop.f32.mrb[0].mxu0
      %v952 = vadd.f32 %v824, %v951
      %v953 = vpop.f32.mrb[0].mxu0
      %954 = vmatprep.mubr.bf16.mxu0 0
      %955 = vmatmul.mubr.bf16.gmra.mrb[0].mxu0 %v793
      %v956 = vpop.f32.mrb[0].mxu0
      %v957 = vadd.f32 %v824, %v956
      %v958 = vpop.f32.mrb[0].mxu0
      %v959 = vpop.f32.mrb[0].mxu0
      %v960 = vadd.f32 %v824, %v959
      %v961 = vpop.f32.mrb[0].mxu0
      %962 = vmatprep.mubr.bf16.mxu0 0
      %963 = vmatmul.mubr.bf16.gmra.mrb[0].mxu0 %v794
      %v964 = vpop.f32.mrb[0].mxu0
      %v965 = vadd.f32 %v824, %v964
      %v966 = vpop.f32.mrb[0].mxu0
      %v967 = vpop.f32.mrb[0].mxu0
      %v968 = vadd.f32 %v824, %v967
      %v969 = vpop.f32.mrb[0].mxu0
      %970 = vmatprep.mubr.bf16.mxu0 0
      %971 = vmatmul.mubr.bf16.gmra.mrb[0].mxu0 %v795
      %v972 = vpop.f32.mrb[0].mxu0
      %v973 = vadd.f32 %v824, %v972
      %v974 = vpop.f32.mrb[0].mxu0
      %v975 = vpop.f32.mrb[0].mxu0
      %v976 = vadd.f32 %v824, %v975
      %v977 = vpop.f32.mrb[0].mxu0
      %978 = vmatprep.mubr.bf16.mxu0 0
      %979 = vmatmul.mubr.bf16.gmra.mrb[0].mxu0 %v796
      %v980 = vpop.f32.mrb[0].mxu0
      %v981 = vadd.f32 %v824, %v980
      %v982 = vpop.f32.mrb[0].mxu0
      %v983 = vpop.f32.mrb[0].mxu0
      %v984 = vadd.f32 %v824, %v983
      %v985 = vpop.f32.mrb[0].mxu0
      %986 = vmatprep.mubr.bf16.mxu0 0
      %987 = vmatmul.mubr.bf16.gmra.mrb[0].mxu0 %v797
      %v988 = vpop.f32.mrb[0].mxu0
      %v989 = vadd.f32 %v824, %v988
      %v990 = vpop.f32.mrb[0].mxu0
      %v991 = vpop.f32.mrb[0].mxu0
      %v992 = vadd.f32 %v824, %v991
      %v993 = vpop.f32.mrb[0].mxu0
      %994 = vmatprep.mubr.bf16.mxu0 0
      %995 = vmatmul.mubr.bf16.gmra.mrb[0].mxu0 %v798
      %v996 = vpop.f32.mrb[0].mxu0
      %v997 = vadd.f32 %v824, %v996
      %v998 = vpop.f32.mrb[0].mxu0
      %v999 = vpop.f32.mrb[0].mxu0
      %v1000 = vadd.f32 %v824, %v999
      %v1001 = vpop.f32.mrb[0].mxu0
      %1002 = vmatprep.mubr.bf16.mxu0 0
      %1003 = vmatmul.mubr.bf16.gmra.mrb[0].mxu0 %v799
      %v1004 = vpop.f32.mrb[0].mxu0
      %v1005 = vadd.f32 %v824, %v1004
      %v1006 = vpop.f32.mrb[0].mxu0
      %v1007 = vpop.f32.mrb[0].mxu0
      %v1008 = vadd.f32 %v824, %v1007
      %v1009 = vpop.f32.mrb[0].mxu0
      %1010 = vmatprep.mubr.bf16.mxu0 0
      %1011 = vmatmul.mubr.bf16.gmra.mrb[0].mxu0 %v800
      %v1012 = vpop.f32.mrb[0].mxu0
      %v1013 = vadd.f32 %v824, %v1012
      %v1014 = vpop.f32.mrb[0].mxu0
      %v1015 = vpop.f32.mrb[0].mxu0
      %v1016 = vadd.f32 %v824, %v1015
      %v1017 = vpop.f32.mrb[0].mxu0
      %1018 = vmatprep.mubr.bf16.mxu0 0
      %1019 = vmatmul.mubr.bf16.gmra.mrb[0].mxu0 %v801
      %v1020 = vpop.f32.mrb[0].mxu0
      %v1021 = vadd.f32 %v824, %v1020
      %v1022 = vpop.f32.mrb[0].mxu0
      %v1023 = vpop.f32.mrb[0].mxu0
      %v1024 = vadd.f32 %v824, %v1023
      %v1025 = vpop.f32.mrb[0].mxu0
      %1026 = vmatprep.mubr.bf16.mxu0 0
      %1027 = vmatmul.mubr.bf16.gmra.mrb[0].mxu0 %v802
      %v1028 = vpop.f32.mrb[0].mxu0
      %v1029 = vadd.f32 %v824, %v1028
      %v1030 = vpop.f32.mrb[0].mxu0
      %v1031 = vpop.f32.mrb[0].mxu0
      %v1032 = vadd.f32 %v824, %v1031
      %v1033 = vpop.f32.mrb[0].mxu0
      %1034 = vdwg.mxu0
      %v1035 = vmax.f32 %v909, 0.0
      %v1036 = vmax.f32 %v912, 0.0
      %v1037 = vmax.f32 %v917, 0.0
      %v1038 = vmax.f32 %v920, 0.0
      %v1039 = vmax.f32 %v925, 0.0
      %v1040 = vmax.f32 %v928, 0.0
      %v1041 = vmax.f32 %v933, 0.0
      %v1042 = vmax.f32 %v936, 0.0
      %v1043 = vmax.f32 %v941, 0.0
      %v1044 = vmax.f32 %v944, 0.0
      %v1045 = vmax.f32 %v949, 0.0
      %v1046 = vmax.f32 %v952, 0.0
      %v1047 = vmax.f32 %v957, 0.0
      %v1048 = vmax.f32 %v960, 0.0
      %v1049 = vmax.f32 %v965, 0.0
      %v1050 = vmax.f32 %v968, 0.0
      %v1051 = vmax.f32 %v973, 0.0
      %v1052 = vmax.f32 %v976, 0.0
      %v1053 = vmax.f32 %v981, 0.0
      %v1054 = vmax.f32 %v984, 0.0
      %v1055 = vmax.f32 %v989, 0.0
      %v1056 = vmax.f32 %v992, 0.0
      %v1057 = vmax.f32 %v997, 0.0
      %v1058 = vmax.f32 %v1000, 0.0
      %v1059 = vmax.f32 %v1005, 0.0
      %v1060 = vmax.f32 %v1008, 0.0
      %v1061 = vmax.f32 %v1013, 0.0
      %v1062 = vmax.f32 %v1016, 0.0
      %v1063 = vmax.f32 %v1021, 0.0
      %v1064 = vmax.f32 %v1024, 0.0
      %v1065 = vmax.f32 %v1029, 0.0
      %v1066 = vmax.f32 %v1032, 0.0
      %v1067 = vpack.c.bf16 %v1036, %v1035
      %v1068 = vpack.c.bf16 %v1038, %v1037
      %v1069 = vpack.c.bf16 %v1040, %v1039
      %v1070 = vpack.c.bf16 %v1042, %v1041
      %v1071 = vpack.c.bf16 %v1044, %v1043
      %v1072 = vpack.c.bf16 %v1046, %v1045
      %v1073 = vpack.c.bf16 %v1048, %v1047
      %v1074 = vpack.c.bf16 %v1050, %v1049
      %v1075 = vpack.c.bf16 %v1052, %v1051
      %v1076 = vpack.c.bf16 %v1054, %v1053
      %v1077 = vpack.c.bf16 %v1056, %v1055
      %v1078 = vpack.c.bf16 %v1058, %v1057
      %v1079 = vpack.c.bf16 %v1060, %v1059
      %v1080 = vpack.c.bf16 %v1062, %v1061
      %v1081 = vpack.c.bf16 %v1064, %v1063
      %v1082 = vpack.c.bf16 %v1066, %v1065
      %v1083 = vld [vmem:[%s5] sm:$0xf]
      %v1084 = vld [vmem:[%s5 + $0x4] sm:$0xf]
      %v1085 = vld [vmem:[%s5 + $0x8] sm:$0xf]
      %v1086 = vld [vmem:[%s5 + $0xc] sm:$0xf]
      %v1087 = vld [vmem:[%s5 + $0x10] sm:$0xf]
      %v1088 = vld [vmem:[%s5 + $0x14] sm:$0xf]
      %v1089 = vld [vmem:[%s5 + $0x18] sm:$0xf]
      %v1090 = vld [vmem:[%s5 + $0x1c] sm:$0xf]
      %v1091 = vld [vmem:[%s5 + $0x20] sm:$0xf]
      %v1092 = vld [vmem:[%s5 + $0x24] sm:$0xf]
      %v1093 = vld [vmem:[%s5 + $0x28] sm:$0xf]
      %v1094 = vld [vmem:[%s5 + $0x2c] sm:$0xf]
      %v1095 = vld [vmem:[%s5 + $0x30] sm:$0xf]
      %v1096 = vld [vmem:[%s5 + $0x34] sm:$0xf]
      %v1097 = vld [vmem:[%s5 + $0x38] sm:$0xf]
      %v1098 = vld [vmem:[%s5 + $0x3c] sm:$0xf]
      %v1099 = vld [vmem:[%s6] sm:$0x1]
      %v1101 = vlaneseq
      %v1102 = vshrl.u32 %v1101, 7
      %v1103 = vsub.s32 0, %v1102
      %v1104 = vrot.slane %v1099, %v1103
      %v1122 = vunpack.c.l.b16 %v1083
      %v1123 = vunpack.c.l.b16 %v1084
      %v1124 = vunpack.c.l.b16 %v1085
      %v1125 = vunpack.c.l.b16 %v1086
      %v1126 = vunpack.c.l.b16 %v1087
      %v1127 = vunpack.c.l.b16 %v1088
      %v1128 = vunpack.c.l.b16 %v1089
      %v1129 = vunpack.c.l.b16 %v1090
      %v1130 = vunpack.c.l.b16 %v1091
      %v1131 = vunpack.c.l.b16 %v1092
      %v1132 = vunpack.c.l.b16 %v1093
      %v1133 = vunpack.c.l.b16 %v1094
      %v1134 = vunpack.c.l.b16 %v1095
      %v1135 = vunpack.c.l.b16 %v1096
      %v1136 = vunpack.c.l.b16 %v1097
      %v1137 = vunpack.c.l.b16 %v1098
      %v1138 = vpack.c.b16 %v1123, %v1122
      %v1139 = vpack.c.b16 %v1125, %v1124
      %v1140 = vpack.c.b16 %v1127, %v1126
      %v1141 = vpack.c.b16 %v1129, %v1128
      %v1142 = vpack.c.b16 %v1131, %v1130
      %v1143 = vpack.c.b16 %v1133, %v1132
      %v1144 = vpack.c.b16 %v1135, %v1134
      %v1145 = vpack.c.b16 %v1137, %v1136
      %1154 = vmatprep.subr.bf16.mxu0 0
      %1155 = vmatpush1.bf16.msra.mxu0 %v1138
      %1156 = vmatprep.subr.bf16.mxu0 0
      %1157 = vmatpush1.bf16.msra.mxu0 %v1139
      %1158 = vmatprep.subr.bf16.mxu0 0
      %1159 = vmatpush1.bf16.msra.mxu0 %v1140
      %1160 = vmatprep.subr.bf16.mxu0 0
      %1161 = vmatpush1.bf16.msra.mxu0 %v1141
      %1162 = vmatprep.subr.bf16.mxu0 0
      %1163 = vmatpush1.bf16.msra.mxu0 %v1142
      %1164 = vmatprep.subr.bf16.mxu0 0
      %1165 = vmatpush1.bf16.msra.mxu0 %v1143
      %1166 = vmatprep.subr.bf16.mxu0 0
      %1167 = vmatpush1.bf16.msra.mxu0 %v1144
      %1168 = vmatprep.subr.bf16.mxu0 0
      %1169 = vmatpush1.bf16.msra.mxu0 %v1145
      %1170 = vmatprep.subr.bf16.mxu0 0
      %1171 = vmatpush1.bf16.msra.mxu0 0
      %1172 = vmatprep.subr.bf16.mxu0 0
      %1173 = vmatpush1.bf16.msra.mxu0 0
      %1174 = vmatprep.subr.bf16.mxu0 0
      %1175 = vmatpush1.bf16.msra.mxu0 0
      %1176 = vmatprep.subr.bf16.mxu0 0
      %1177 = vmatpush1.bf16.msra.mxu0 0
      %1178 = vmatprep.subr.bf16.mxu0 0
      %1179 = vmatpush1.bf16.msra.mxu0 0
      %1180 = vmatprep.subr.bf16.mxu0 0
      %1181 = vmatpush1.bf16.msra.mxu0 0
      %1182 = vmatprep.subr.bf16.mxu0 0
      %1183 = vmatpush1.bf16.msra.mxu0 0
      %1184 = vmatprep.subr.bf16.mxu0 0
      %1185 = vmatpush1.bf16.msra.mxu0 0
      %1186 = vmatprep.mubr.bf16.mxu0 0
      %1187 = vmatmul.mubr.bf16.gmra.mrb[0].mxu0 %v1067
      %v1188 = vpop.f32.mrb[0].mxu0
      %v1189 = vadd.f32 %v1104, %v1188
      %v1190 = vpop.f32.mrb[0].mxu0
      %v1191 = vpop.f32.mrb[0].mxu0
      %v1192 = vadd.f32 %v1104, %v1191
      %v1193 = vpop.f32.mrb[0].mxu0
      %1194 = vmatprep.mubr.bf16.mxu0 0
      %1195 = vmatmul.mubr.bf16.gmra.mrb[0].mxu0 %v1068
      %v1196 = vpop.f32.mrb[0].mxu0
      %v1197 = vadd.f32 %v1104, %v1196
      %v1198 = vpop.f32.mrb[0].mxu0
      %v1199 = vpop.f32.mrb[0].mxu0
      %v1200 = vadd.f32 %v1104, %v1199
      %v1201 = vpop.f32.mrb[0].mxu0
      %1202 = vmatprep.mubr.bf16.mxu0 0
      %1203 = vmatmul.mubr.bf16.gmra.mrb[0].mxu0 %v1069
      %v1204 = vpop.f32.mrb[0].mxu0
      %v1205 = vadd.f32 %v1104, %v1204
      %v1206 = vpop.f32.mrb[0].mxu0
      %v1207 = vpop.f32.mrb[0].mxu0
      %v1208 = vadd.f32 %v1104, %v1207
      %v1209 = vpop.f32.mrb[0].mxu0
      %1210 = vmatprep.mubr.bf16.mxu0 0
      %1211 = vmatmul.mubr.bf16.gmra.mrb[0].mxu0 %v1070
      %v1212 = vpop.f32.mrb[0].mxu0
      %v1213 = vadd.f32 %v1104, %v1212
      %v1214 = vpop.f32.mrb[0].mxu0
      %v1215 = vpop.f32.mrb[0].mxu0
      %v1216 = vadd.f32 %v1104, %v1215
      %v1217 = vpop.f32.mrb[0].mxu0
      %1218 = vmatprep.mubr.bf16.mxu0 0
      %1219 = vmatmul.mubr.bf16.gmra.mrb[0].mxu0 %v1071
      %v1220 = vpop.f32.mrb[0].mxu0
      %v1221 = vadd.f32 %v1104, %v1220
      %v1222 = vpop.f32.mrb[0].mxu0
      %v1223 = vpop.f32.mrb[0].mxu0
      %v1224 = vadd.f32 %v1104, %v1223
      %v1225 = vpop.f32.mrb[0].mxu0
      %1226 = vmatprep.mubr.bf16.mxu0 0
      %1227 = vmatmul.mubr.bf16.gmra.mrb[0].mxu0 %v1072
      %v1228 = vpop.f32.mrb[0].mxu0
      %v1229 = vadd.f32 %v1104, %v1228
      %v1230 = vpop.f32.mrb[0].mxu0
      %v1231 = vpop.f32.mrb[0].mxu0
      %v1232 = vadd.f32 %v1104, %v1231
      %v1233 = vpop.f32.mrb[0].mxu0
      %1234 = vmatprep.mubr.bf16.mxu0 0
      %1235 = vmatmul.mubr.bf16.gmra.mrb[0].mxu0 %v1073
      %v1236 = vpop.f32.mrb[0].mxu0
      %v1237 = vadd.f32 %v1104, %v1236
      %v1238 = vpop.f32.mrb[0].mxu0
      %v1239 = vpop.f32.mrb[0].mxu0
      %v1240 = vadd.f32 %v1104, %v1239
      %v1241 = vpop.f32.mrb[0].mxu0
      %1242 = vmatprep.mubr.bf16.mxu0 0
      %1243 = vmatmul.mubr.bf16.gmra.mrb[0].mxu0 %v1074
      %v1244 = vpop.f32.mrb[0].mxu0
      %v1245 = vadd.f32 %v1104, %v1244
      %v1246 = vpop.f32.mrb[0].mxu0
      %v1247 = vpop.f32.mrb[0].mxu0
      %v1248 = vadd.f32 %v1104, %v1247
      %v1249 = vpop.f32.mrb[0].mxu0
      %1250 = vmatprep.mubr.bf16.mxu0 0
      %1251 = vmatmul.mubr.bf16.gmra.mrb[0].mxu0 %v1075
      %v1252 = vpop.f32.mrb[0].mxu0
      %v1253 = vadd.f32 %v1104, %v1252
      %v1254 = vpop.f32.mrb[0].mxu0
      %v1255 = vpop.f32.mrb[0].mxu0
      %v1256 = vadd.f32 %v1104, %v1255
      %v1257 = vpop.f32.mrb[0].mxu0
      %1258 = vmatprep.mubr.bf16.mxu0 0
      %1259 = vmatmul.mubr.bf16.gmra.mrb[0].mxu0 %v1076
      %v1260 = vpop.f32.mrb[0].mxu0
      %v1261 = vadd.f32 %v1104, %v1260
      %v1262 = vpop.f32.mrb[0].mxu0
      %v1263 = vpop.f32.mrb[0].mxu0
      %v1264 = vadd.f32 %v1104, %v1263
      %v1265 = vpop.f32.mrb[0].mxu0
      %1266 = vmatprep.mubr.bf16.mxu0 0
      %1267 = vmatmul.mubr.bf16.gmra.mrb[0].mxu0 %v1077
      %v1268 = vpop.f32.mrb[0].mxu0
      %v1269 = vadd.f32 %v1104, %v1268
      %v1270 = vpop.f32.mrb[0].mxu0
      %v1271 = vpop.f32.mrb[0].mxu0
      %v1272 = vadd.f32 %v1104, %v1271
      %v1273 = vpop.f32.mrb[0].mxu0
      %1274 = vmatprep.mubr.bf16.mxu0 0
      %1275 = vmatmul.mubr.bf16.gmra.mrb[0].mxu0 %v1078
      %v1276 = vpop.f32.mrb[0].mxu0
      %v1277 = vadd.f32 %v1104, %v1276
      %v1278 = vpop.f32.mrb[0].mxu0
      %v1279 = vpop.f32.mrb[0].mxu0
      %v1280 = vadd.f32 %v1104, %v1279
      %v1281 = vpop.f32.mrb[0].mxu0
      %1282 = vmatprep.mubr.bf16.mxu0 0
      %1283 = vmatmul.mubr.bf16.gmra.mrb[0].mxu0 %v1079
      %v1284 = vpop.f32.mrb[0].mxu0
      %v1285 = vadd.f32 %v1104, %v1284
      %v1286 = vpop.f32.mrb[0].mxu0
      %v1287 = vpop.f32.mrb[0].mxu0
      %v1288 = vadd.f32 %v1104, %v1287
      %v1289 = vpop.f32.mrb[0].mxu0
      %1290 = vmatprep.mubr.bf16.mxu0 0
      %1291 = vmatmul.mubr.bf16.gmra.mrb[0].mxu0 %v1080
      %v1292 = vpop.f32.mrb[0].mxu0
      %v1293 = vadd.f32 %v1104, %v1292
      %v1294 = vpop.f32.mrb[0].mxu0
      %v1295 = vpop.f32.mrb[0].mxu0
      %v1296 = vadd.f32 %v1104, %v1295
      %v1297 = vpop.f32.mrb[0].mxu0
      %1298 = vmatprep.mubr.bf16.mxu0 0
      %1299 = vmatmul.mubr.bf16.gmra.mrb[0].mxu0 %v1081
      %v1300 = vpop.f32.mrb[0].mxu0
      %v1301 = vadd.f32 %v1104, %v1300
      %v1302 = vpop.f32.mrb[0].mxu0
      %v1303 = vpop.f32.mrb[0].mxu0
      %v1304 = vadd.f32 %v1104, %v1303
      %v1305 = vpop.f32.mrb[0].mxu0
      %1306 = vmatprep.mubr.bf16.mxu0 0
      %1307 = vmatmul.mubr.bf16.gmra.mrb[0].mxu0 %v1082
      %v1308 = vpop.f32.mrb[0].mxu0
      %v1309 = vadd.f32 %v1104, %v1308
      %v1310 = vpop.f32.mrb[0].mxu0
      %v1311 = vpop.f32.mrb[0].mxu0
      %v1312 = vadd.f32 %v1104, %v1311
      %v1313 = vpop.f32.mrb[0].mxu0
      %1314 = vdwg.mxu0
      %v1315 = vmax.f32 %v1189, 0.0
      %v1316 = vmax.f32 %v1192, 0.0
      %v1317 = vmax.f32 %v1197, 0.0
      %v1318 = vmax.f32 %v1200, 0.0
      %v1319 = vmax.f32 %v1205, 0.0
      %v1320 = vmax.f32 %v1208, 0.0
      %v1321 = vmax.f32 %v1213, 0.0
      %v1322 = vmax.f32 %v1216, 0.0
      %v1323 = vmax.f32 %v1221, 0.0
      %v1324 = vmax.f32 %v1224, 0.0
      %v1325 = vmax.f32 %v1229, 0.0
      %v1326 = vmax.f32 %v1232, 0.0
      %v1327 = vmax.f32 %v1237, 0.0
      %v1328 = vmax.f32 %v1240, 0.0
      %v1329 = vmax.f32 %v1245, 0.0
      %v1330 = vmax.f32 %v1248, 0.0
      %v1331 = vmax.f32 %v1253, 0.0
      %v1332 = vmax.f32 %v1256, 0.0
      %v1333 = vmax.f32 %v1261, 0.0
      %v1334 = vmax.f32 %v1264, 0.0
      %v1335 = vmax.f32 %v1269, 0.0
      %v1336 = vmax.f32 %v1272, 0.0
      %v1337 = vmax.f32 %v1277, 0.0
      %v1338 = vmax.f32 %v1280, 0.0
      %v1339 = vmax.f32 %v1285, 0.0
      %v1340 = vmax.f32 %v1288, 0.0
      %v1341 = vmax.f32 %v1293, 0.0
      %v1342 = vmax.f32 %v1296, 0.0
      %v1343 = vmax.f32 %v1301, 0.0
      %v1344 = vmax.f32 %v1304, 0.0
      %v1345 = vmax.f32 %v1309, 0.0
      %v1346 = vmax.f32 %v1312, 0.0
      %v1347 = vpack.c.bf16 %v1316, %v1315
      %v1348 = vpack.c.bf16 %v1318, %v1317
      %v1349 = vpack.c.bf16 %v1320, %v1319
      %v1350 = vpack.c.bf16 %v1322, %v1321
      %v1351 = vpack.c.bf16 %v1324, %v1323
      %v1352 = vpack.c.bf16 %v1326, %v1325
      %v1353 = vpack.c.bf16 %v1328, %v1327
      %v1354 = vpack.c.bf16 %v1330, %v1329
      %v1355 = vpack.c.bf16 %v1332, %v1331
      %v1356 = vpack.c.bf16 %v1334, %v1333
      %v1357 = vpack.c.bf16 %v1336, %v1335
      %v1358 = vpack.c.bf16 %v1338, %v1337
      %v1359 = vpack.c.bf16 %v1340, %v1339
      %v1360 = vpack.c.bf16 %v1342, %v1341
      %v1361 = vpack.c.bf16 %v1344, %v1343
      %v1362 = vpack.c.bf16 %v1346, %v1345
      %v1363 = vld [vmem:[%s7] sm:$0xf]
      %v1364 = vld [vmem:[%s7 + $0x4] sm:$0xf]
      %v1365 = vld [vmem:[%s7 + $0x8] sm:$0xf]
      %v1366 = vld [vmem:[%s7 + $0xc] sm:$0xf]
      %v1367 = vld [vmem:[%s7 + $0x10] sm:$0xf]
      %v1368 = vld [vmem:[%s7 + $0x14] sm:$0xf]
      %v1369 = vld [vmem:[%s7 + $0x18] sm:$0xf]
      %v1370 = vld [vmem:[%s7 + $0x1c] sm:$0xf]
      %v1371 = vld [vmem:[%s7 + $0x20] sm:$0xf]
      %v1372 = vld [vmem:[%s7 + $0x24] sm:$0xf]
      %v1373 = vld [vmem:[%s7 + $0x28] sm:$0xf]
      %v1374 = vld [vmem:[%s7 + $0x2c] sm:$0xf]
      %v1375 = vld [vmem:[%s7 + $0x30] sm:$0xf]
      %v1376 = vld [vmem:[%s7 + $0x34] sm:$0xf]
      %v1377 = vld [vmem:[%s7 + $0x38] sm:$0xf]
      %v1378 = vld [vmem:[%s7 + $0x3c] sm:$0xf]
      %v1379 = vld [vmem:[%s8] sm:$0x1]
      %v1381 = vlaneseq
      %v1382 = vshrl.u32 %v1381, 7
      %v1383 = vsub.s32 0, %v1382
      %v1384 = vrot.slane %v1379, %v1383
      %v1402 = vunpack.c.l.b16 %v1363
      %v1403 = vunpack.c.l.b16 %v1364
      %v1404 = vunpack.c.l.b16 %v1365
      %v1405 = vunpack.c.l.b16 %v1366
      %v1406 = vunpack.c.l.b16 %v1367
      %v1407 = vunpack.c.l.b16 %v1368
      %v1408 = vunpack.c.l.b16 %v1369
      %v1409 = vunpack.c.l.b16 %v1370
      %v1410 = vunpack.c.l.b16 %v1371
      %v1411 = vunpack.c.l.b16 %v1372
      %v1412 = vunpack.c.l.b16 %v1373
      %v1413 = vunpack.c.l.b16 %v1374
      %v1414 = vunpack.c.l.b16 %v1375
      %v1415 = vunpack.c.l.b16 %v1376
      %v1416 = vunpack.c.l.b16 %v1377
      %v1417 = vunpack.c.l.b16 %v1378
      %v1418 = vpack.c.b16 %v1403, %v1402
      %v1419 = vpack.c.b16 %v1405, %v1404
      %v1420 = vpack.c.b16 %v1407, %v1406
      %v1421 = vpack.c.b16 %v1409, %v1408
      %v1422 = vpack.c.b16 %v1411, %v1410
      %v1423 = vpack.c.b16 %v1413, %v1412
      %v1424 = vpack.c.b16 %v1415, %v1414
      %v1425 = vpack.c.b16 %v1417, %v1416
      %1434 = vmatprep.subr.bf16.mxu0 0
      %1435 = vmatpush1.bf16.msra.mxu0 %v1418
      %1436 = vmatprep.subr.bf16.mxu0 0
      %1437 = vmatpush1.bf16.msra.mxu0 %v1419
      %1438 = vmatprep.subr.bf16.mxu0 0
      %1439 = vmatpush1.bf16.msra.mxu0 %v1420
      %1440 = vmatprep.subr.bf16.mxu0 0
      %1441 = vmatpush1.bf16.msra.mxu0 %v1421
      %1442 = vmatprep.subr.bf16.mxu0 0
      %1443 = vmatpush1.bf16.msra.mxu0 %v1422
      %1444 = vmatprep.subr.bf16.mxu0 0
      %1445 = vmatpush1.bf16.msra.mxu0 %v1423
      %1446 = vmatprep.subr.bf16.mxu0 0
      %1447 = vmatpush1.bf16.msra.mxu0 %v1424
      %1448 = vmatprep.subr.bf16.mxu0 0
      %1449 = vmatpush1.bf16.msra.mxu0 %v1425
      %1450 = vmatprep.subr.bf16.mxu0 0
      %1451 = vmatpush1.bf16.msra.mxu0 0
      %1452 = vmatprep.subr.bf16.mxu0 0
      %1453 = vmatpush1.bf16.msra.mxu0 0
      %1454 = vmatprep.subr.bf16.mxu0 0
      %1455 = vmatpush1.bf16.msra.mxu0 0
      %1456 = vmatprep.subr.bf16.mxu0 0
      %1457 = vmatpush1.bf16.msra.mxu0 0
      %1458 = vmatprep.subr.bf16.mxu0 0
      %1459 = vmatpush1.bf16.msra.mxu0 0
      %1460 = vmatprep.subr.bf16.mxu0 0
      %1461 = vmatpush1.bf16.msra.mxu0 0
      %1462 = vmatprep.subr.bf16.mxu0 0
      %1463 = vmatpush1.bf16.msra.mxu0 0
      %1464 = vmatprep.subr.bf16.mxu0 0
      %1465 = vmatpush1.bf16.msra.mxu0 0
      %1466 = vmatprep.mubr.bf16.mxu0 0
      %1467 = vmatmul.mubr.bf16.gmra.mrb[0].mxu0 %v1347
      %v1468 = vpop.f32.mrb[0].mxu0
      %v1469 = vadd.f32 %v1384, %v1468
      %v1470 = vpop.f32.mrb[0].mxu0
      %v1471 = vpop.f32.mrb[0].mxu0
      %v1472 = vadd.f32 %v1384, %v1471
      %v1473 = vpop.f32.mrb[0].mxu0
      %1474 = vmatprep.mubr.bf16.mxu0 0
      %1475 = vmatmul.mubr.bf16.gmra.mrb[0].mxu0 %v1348
      %v1476 = vpop.f32.mrb[0].mxu0
      %v1477 = vadd.f32 %v1384, %v1476
      %v1478 = vpop.f32.mrb[0].mxu0
      %v1479 = vpop.f32.mrb[0].mxu0
      %v1480 = vadd.f32 %v1384, %v1479
      %v1481 = vpop.f32.mrb[0].mxu0
      %1482 = vmatprep.mubr.bf16.mxu0 0
      %1483 = vmatmul.mubr.bf16.gmra.mrb[0].mxu0 %v1349
      %v1484 = vpop.f32.mrb[0].mxu0
      %v1485 = vadd.f32 %v1384, %v1484
      %v1486 = vpop.f32.mrb[0].mxu0
      %v1487 = vpop.f32.mrb[0].mxu0
      %v1488 = vadd.f32 %v1384, %v1487
      %v1489 = vpop.f32.mrb[0].mxu0
      %1490 = vmatprep.mubr.bf16.mxu0 0
      %1491 = vmatmul.mubr.bf16.gmra.mrb[0].mxu0 %v1350
      %v1492 = vpop.f32.mrb[0].mxu0
      %v1493 = vadd.f32 %v1384, %v1492
      %v1494 = vpop.f32.mrb[0].mxu0
      %v1495 = vpop.f32.mrb[0].mxu0
      %v1496 = vadd.f32 %v1384, %v1495
      %v1497 = vpop.f32.mrb[0].mxu0
      %1498 = vmatprep.mubr.bf16.mxu0 0
      %1499 = vmatmul.mubr.bf16.gmra.mrb[0].mxu0 %v1351
      %v1500 = vpop.f32.mrb[0].mxu0
      %v1501 = vadd.f32 %v1384, %v1500
      %v1502 = vpop.f32.mrb[0].mxu0
      %v1503 = vpop.f32.mrb[0].mxu0
      %v1504 = vadd.f32 %v1384, %v1503
      %v1505 = vpop.f32.mrb[0].mxu0
      %1506 = vmatprep.mubr.bf16.mxu0 0
      %1507 = vmatmul.mubr.bf16.gmra.mrb[0].mxu0 %v1352
      %v1508 = vpop.f32.mrb[0].mxu0
      %v1509 = vadd.f32 %v1384, %v1508
      %v1510 = vpop.f32.mrb[0].mxu0
      %v1511 = vpop.f32.mrb[0].mxu0
      %v1512 = vadd.f32 %v1384, %v1511
      %v1513 = vpop.f32.mrb[0].mxu0
      %1514 = vmatprep.mubr.bf16.mxu0 0
      %1515 = vmatmul.mubr.bf16.gmra.mrb[0].mxu0 %v1353
      %v1516 = vpop.f32.mrb[0].mxu0
      %v1517 = vadd.f32 %v1384, %v1516
      %v1518 = vpop.f32.mrb[0].mxu0
      %v1519 = vpop.f32.mrb[0].mxu0
      %v1520 = vadd.f32 %v1384, %v1519
      %v1521 = vpop.f32.mrb[0].mxu0
      %1522 = vmatprep.mubr.bf16.mxu0 0
      %1523 = vmatmul.mubr.bf16.gmra.mrb[0].mxu0 %v1354
      %v1524 = vpop.f32.mrb[0].mxu0
      %v1525 = vadd.f32 %v1384, %v1524
      %v1526 = vpop.f32.mrb[0].mxu0
      %v1527 = vpop.f32.mrb[0].mxu0
      %v1528 = vadd.f32 %v1384, %v1527
      %v1529 = vpop.f32.mrb[0].mxu0
      %1530 = vmatprep.mubr.bf16.mxu0 0
      %1531 = vmatmul.mubr.bf16.gmra.mrb[0].mxu0 %v1355
      %v1532 = vpop.f32.mrb[0].mxu0
      %v1533 = vadd.f32 %v1384, %v1532
      %v1534 = vpop.f32.mrb[0].mxu0
      %v1535 = vpop.f32.mrb[0].mxu0
      %v1536 = vadd.f32 %v1384, %v1535
      %v1537 = vpop.f32.mrb[0].mxu0
      %1538 = vmatprep.mubr.bf16.mxu0 0
      %1539 = vmatmul.mubr.bf16.gmra.mrb[0].mxu0 %v1356
      %v1540 = vpop.f32.mrb[0].mxu0
      %v1541 = vadd.f32 %v1384, %v1540
      %v1542 = vpop.f32.mrb[0].mxu0
      %v1543 = vpop.f32.mrb[0].mxu0
      %v1544 = vadd.f32 %v1384, %v1543
      %v1545 = vpop.f32.mrb[0].mxu0
      %1546 = vmatprep.mubr.bf16.mxu0 0
      %1547 = vmatmul.mubr.bf16.gmra.mrb[0].mxu0 %v1357
      %v1548 = vpop.f32.mrb[0].mxu0
      %v1549 = vadd.f32 %v1384, %v1548
      %v1550 = vpop.f32.mrb[0].mxu0
      %v1551 = vpop.f32.mrb[0].mxu0
      %v1552 = vadd.f32 %v1384, %v1551
      %v1553 = vpop.f32.mrb[0].mxu0
      %1554 = vmatprep.mubr.bf16.mxu0 0
      %1555 = vmatmul.mubr.bf16.gmra.mrb[0].mxu0 %v1358
      %v1556 = vpop.f32.mrb[0].mxu0
      %v1557 = vadd.f32 %v1384, %v1556
      %v1558 = vpop.f32.mrb[0].mxu0
      %v1559 = vpop.f32.mrb[0].mxu0
      %v1560 = vadd.f32 %v1384, %v1559
      %v1561 = vpop.f32.mrb[0].mxu0
      %1562 = vmatprep.mubr.bf16.mxu0 0
      %1563 = vmatmul.mubr.bf16.gmra.mrb[0].mxu0 %v1359
      %v1564 = vpop.f32.mrb[0].mxu0
      %v1565 = vadd.f32 %v1384, %v1564
      %v1566 = vpop.f32.mrb[0].mxu0
      %v1567 = vpop.f32.mrb[0].mxu0
      %v1568 = vadd.f32 %v1384, %v1567
      %v1569 = vpop.f32.mrb[0].mxu0
      %1570 = vmatprep.mubr.bf16.mxu0 0
      %1571 = vmatmul.mubr.bf16.gmra.mrb[0].mxu0 %v1360
      %v1572 = vpop.f32.mrb[0].mxu0
      %v1573 = vadd.f32 %v1384, %v1572
      %v1574 = vpop.f32.mrb[0].mxu0
      %v1575 = vpop.f32.mrb[0].mxu0
      %v1576 = vadd.f32 %v1384, %v1575
      %v1577 = vpop.f32.mrb[0].mxu0
      %1578 = vmatprep.mubr.bf16.mxu0 0
      %1579 = vmatmul.mubr.bf16.gmra.mrb[0].mxu0 %v1361
      %v1580 = vpop.f32.mrb[0].mxu0
      %v1581 = vadd.f32 %v1384, %v1580
      %v1582 = vpop.f32.mrb[0].mxu0
      %v1583 = vpop.f32.mrb[0].mxu0
      %v1584 = vadd.f32 %v1384, %v1583
      %v1585 = vpop.f32.mrb[0].mxu0
      %1586 = vmatprep.mubr.bf16.mxu0 0
      %1587 = vmatmul.mubr.bf16.gmra.mrb[0].mxu0 %v1362
      %v1588 = vpop.f32.mrb[0].mxu0
      %v1589 = vadd.f32 %v1384, %v1588
      %v1590 = vpop.f32.mrb[0].mxu0
      %v1591 = vpop.f32.mrb[0].mxu0
      %v1592 = vadd.f32 %v1384, %v1591
      %v1593 = vpop.f32.mrb[0].mxu0
      %1594 = vdwg.mxu0
      %v1595 = vmax.f32 %v1469, 0.0
      %v1596 = vmax.f32 %v1472, 0.0
      %v1597 = vmax.f32 %v1477, 0.0
      %v1598 = vmax.f32 %v1480, 0.0
      %v1599 = vmax.f32 %v1485, 0.0
      %v1600 = vmax.f32 %v1488, 0.0
      %v1601 = vmax.f32 %v1493, 0.0
      %v1602 = vmax.f32 %v1496, 0.0
      %v1603 = vmax.f32 %v1501, 0.0
      %v1604 = vmax.f32 %v1504, 0.0
      %v1605 = vmax.f32 %v1509, 0.0
      %v1606 = vmax.f32 %v1512, 0.0
      %v1607 = vmax.f32 %v1517, 0.0
      %v1608 = vmax.f32 %v1520, 0.0
      %v1609 = vmax.f32 %v1525, 0.0
      %v1610 = vmax.f32 %v1528, 0.0
      %v1611 = vmax.f32 %v1533, 0.0
      %v1612 = vmax.f32 %v1536, 0.0
      %v1613 = vmax.f32 %v1541, 0.0
      %v1614 = vmax.f32 %v1544, 0.0
      %v1615 = vmax.f32 %v1549, 0.0
      %v1616 = vmax.f32 %v1552, 0.0
      %v1617 = vmax.f32 %v1557, 0.0
      %v1618 = vmax.f32 %v1560, 0.0
      %v1619 = vmax.f32 %v1565, 0.0
      %v1620 = vmax.f32 %v1568, 0.0
      %v1621 = vmax.f32 %v1573, 0.0
      %v1622 = vmax.f32 %v1576, 0.0
      %v1623 = vmax.f32 %v1581, 0.0
      %v1624 = vmax.f32 %v1584, 0.0
      %v1625 = vmax.f32 %v1589, 0.0
      %v1626 = vmax.f32 %v1592, 0.0
      %v1627 = vld [vmem:[%s9] sm:$0x1]
      %v1629 = vlaneseq
      %v1630 = vshrl.u32 %v1629, 7
      %v1631 = vsub.s32 0, %v1630
      %v1632 = vrot.slane %v1627, %v1631
      %v1634 = vmul.f32 %v1595, %v1632
      %v1635 = vmul.f32 %v1596, %v1632
      %v1636 = vmul.f32 %v1597, %v1632
      %v1637 = vmul.f32 %v1598, %v1632
      %v1638 = vmul.f32 %v1599, %v1632
      %v1639 = vmul.f32 %v1600, %v1632
      %v1640 = vmul.f32 %v1601, %v1632
      %v1641 = vmul.f32 %v1602, %v1632
      %v1642 = vmul.f32 %v1603, %v1632
      %v1643 = vmul.f32 %v1604, %v1632
      %v1644 = vmul.f32 %v1605, %v1632
      %v1645 = vmul.f32 %v1606, %v1632
      %v1646 = vmul.f32 %v1607, %v1632
      %v1647 = vmul.f32 %v1608, %v1632
      %v1648 = vmul.f32 %v1609, %v1632
      %v1649 = vmul.f32 %v1610, %v1632
      %v1650 = vmul.f32 %v1611, %v1632
      %v1651 = vmul.f32 %v1612, %v1632
      %v1652 = vmul.f32 %v1613, %v1632
      %v1653 = vmul.f32 %v1614, %v1632
      %v1654 = vmul.f32 %v1615, %v1632
      %v1655 = vmul.f32 %v1616, %v1632
      %v1656 = vmul.f32 %v1617, %v1632
      %v1657 = vmul.f32 %v1618, %v1632
      %v1658 = vmul.f32 %v1619, %v1632
      %v1659 = vmul.f32 %v1620, %v1632
      %v1660 = vmul.f32 %v1621, %v1632
      %v1661 = vmul.f32 %v1622, %v1632
      %v1662 = vmul.f32 %v1623, %v1632
      %v1663 = vmul.f32 %v1624, %v1632
      %v1664 = vmul.f32 %v1625, %v1632
      %v1665 = vmul.f32 %v1626, %v1632
      %1666 = vadd.xlane.f32.xlu0 %v1634
      %v1667 = vpop.xlane.xlu0 %1666
      %1668 = vadd.xlane.f32.xlu0 %v1635
      %v1669 = vpop.xlane.xlu0 %1668
      %1670 = vadd.xlane.f32.xlu0 %v1636
      %v1671 = vpop.xlane.xlu0 %1670
      %1672 = vadd.xlane.f32.xlu0 %v1637
      %v1673 = vpop.xlane.xlu0 %1672
      %1674 = vadd.xlane.f32.xlu0 %v1638
      %v1675 = vpop.xlane.xlu0 %1674
      %1676 = vadd.xlane.f32.xlu0 %v1639
      %v1677 = vpop.xlane.xlu0 %1676
      %1678 = vadd.xlane.f32.xlu0 %v1640
      %v1679 = vpop.xlane.xlu0 %1678
      %1680 = vadd.xlane.f32.xlu0 %v1641
      %v1681 = vpop.xlane.xlu0 %1680
      %1682 = vadd.xlane.f32.xlu0 %v1642
      %v1683 = vpop.xlane.xlu0 %1682
      %1684 = vadd.xlane.f32.xlu0 %v1643
      %v1685 = vpop.xlane.xlu0 %1684
      %1686 = vadd.xlane.f32.xlu0 %v1644
      %v1687 = vpop.xlane.xlu0 %1686
      %1688 = vadd.xlane.f32.xlu0 %v1645
      %v1689 = vpop.xlane.xlu0 %1688
      %1690 = vadd.xlane.f32.xlu0 %v1646
      %v1691 = vpop.xlane.xlu0 %1690
      %1692 = vadd.xlane.f32.xlu0 %v1647
      %v1693 = vpop.xlane.xlu0 %1692
      %1694 = vadd.xlane.f32.xlu0 %v1648
      %v1695 = vpop.xlane.xlu0 %1694
      %1696 = vadd.xlane.f32.xlu0 %v1649
      %v1697 = vpop.xlane.xlu0 %1696
      %1698 = vadd.xlane.f32.xlu0 %v1650
      %v1699 = vpop.xlane.xlu0 %1698
      %1700 = vadd.xlane.f32.xlu0 %v1651
      %v1701 = vpop.xlane.xlu0 %1700
      %1702 = vadd.xlane.f32.xlu0 %v1652
      %v1703 = vpop.xlane.xlu0 %1702
      %1704 = vadd.xlane.f32.xlu0 %v1653
      %v1705 = vpop.xlane.xlu0 %1704
      %1706 = vadd.xlane.f32.xlu0 %v1654
      %v1707 = vpop.xlane.xlu0 %1706
      %1708 = vadd.xlane.f32.xlu0 %v1655
      %v1709 = vpop.xlane.xlu0 %1708
      %1710 = vadd.xlane.f32.xlu0 %v1656
      %v1711 = vpop.xlane.xlu0 %1710
      %1712 = vadd.xlane.f32.xlu0 %v1657
      %v1713 = vpop.xlane.xlu0 %1712
      %1714 = vadd.xlane.f32.xlu0 %v1658
      %v1715 = vpop.xlane.xlu0 %1714
      %1716 = vadd.xlane.f32.xlu0 %v1659
      %v1717 = vpop.xlane.xlu0 %1716
      %1718 = vadd.xlane.f32.xlu0 %v1660
      %v1719 = vpop.xlane.xlu0 %1718
      %1720 = vadd.xlane.f32.xlu0 %v1661
      %v1721 = vpop.xlane.xlu0 %1720
      %1722 = vadd.xlane.f32.xlu0 %v1662
      %v1723 = vpop.xlane.xlu0 %1722
      %1724 = vadd.xlane.f32.xlu0 %v1663
      %v1725 = vpop.xlane.xlu0 %1724
      %1726 = vadd.xlane.f32.xlu0 %v1664
      %v1727 = vpop.xlane.xlu0 %1726
      %1728 = vadd.xlane.f32.xlu0 %v1665
      %v1729 = vpop.xlane.xlu0 %1728
      %v1730 = vld [vmem:[%s377] sm:$0xff]
      %v1731 = vld [vmem:[%s377 + $0x8] sm:$0xff]
      %v1732 = vld [vmem:[%s377 + $0x10] sm:$0xff]
      %v1733 = vld [vmem:[%s377 + $0x18] sm:$0xff]
      %v1734 = vld [vmem:[%s377 + $0x20] sm:$0xff]
      %v1735 = vld [vmem:[%s377 + $0x28] sm:$0xff]
      %v1736 = vld [vmem:[%s377 + $0x30] sm:$0xff]
      %v1737 = vld [vmem:[%s377 + $0x38] sm:$0xff]
      %v1738 = vld [vmem:[%s377 + $0x40] sm:$0xff]
      %v1739 = vld [vmem:[%s377 + $0x48] sm:$0xff]
      %v1740 = vld [vmem:[%s377 + $0x50] sm:$0xff]
      %v1741 = vld [vmem:[%s377 + $0x58] sm:$0xff]
      %v1742 = vld [vmem:[%s377 + $0x60] sm:$0xff]
      %v1743 = vld [vmem:[%s377 + $0x68] sm:$0xff]
      %v1744 = vld [vmem:[%s377 + $0x70] sm:$0xff]
      %v1745 = vld [vmem:[%s377 + $0x78] sm:$0xff]
      %v1746 = vld [vmem:[%s377 + $0x80] sm:$0xff]
      %v1747 = vld [vmem:[%s377 + $0x88] sm:$0xff]
      %v1748 = vld [vmem:[%s377 + $0x90] sm:$0xff]
      %v1749 = vld [vmem:[%s377 + $0x98] sm:$0xff]
      %v1750 = vld [vmem:[%s377 + $0xa0] sm:$0xff]
      %v1751 = vld [vmem:[%s377 + $0xa8] sm:$0xff]
      %v1752 = vld [vmem:[%s377 + $0xb0] sm:$0xff]
      %v1753 = vld [vmem:[%s377 + $0xb8] sm:$0xff]
      %v1754 = vld [vmem:[%s377 + $0xc0] sm:$0xff]
      %v1755 = vld [vmem:[%s377 + $0xc8] sm:$0xff]
      %v1756 = vld [vmem:[%s377 + $0xd0] sm:$0xff]
      %v1757 = vld [vmem:[%s377 + $0xd8] sm:$0xff]
      %v1758 = vld [vmem:[%s377 + $0xe0] sm:$0xff]
      %v1759 = vld [vmem:[%s377 + $0xe8] sm:$0xff]
      %v1760 = vld [vmem:[%s377 + $0xf0] sm:$0xff]
      %v1761 = vld [vmem:[%s377 + $0xf8] sm:$0xff]
      %v1762 = vadd.f32 %v1730, %v755
      %v1763 = vadd.f32 %v1731, %v756
      %v1764 = vadd.f32 %v1732, %v757
      %v1765 = vadd.f32 %v1733, %v758
      %v1766 = vadd.f32 %v1734, %v759
      %v1767 = vadd.f32 %v1735, %v760
      %v1768 = vadd.f32 %v1736, %v761
      %v1769 = vadd.f32 %v1737, %v762
      %v1770 = vadd.f32 %v1738, %v763
      %v1771 = vadd.f32 %v1739, %v764
      %v1772 = vadd.f32 %v1740, %v765
      %v1773 = vadd.f32 %v1741, %v766
      %v1774 = vadd.f32 %v1742, %v767
      %v1775 = vadd.f32 %v1743, %v768
      %v1776 = vadd.f32 %v1744, %v769
      %v1777 = vadd.f32 %v1745, %v770
      %v1778 = vadd.f32 %v1746, %v771
      %v1779 = vadd.f32 %v1747, %v772
      %v1780 = vadd.f32 %v1748, %v773
      %v1781 = vadd.f32 %v1749, %v774
      %v1782 = vadd.f32 %v1750, %v775
      %v1783 = vadd.f32 %v1751, %v776
      %v1784 = vadd.f32 %v1752, %v777
      %v1785 = vadd.f32 %v1753, %v778
      %v1786 = vadd.f32 %v1754, %v779
      %v1787 = vadd.f32 %v1755, %v780
      %v1788 = vadd.f32 %v1756, %v781
      %v1789 = vadd.f32 %v1757, %v782
      %v1790 = vadd.f32 %v1758, %v783
      %v1791 = vadd.f32 %v1759, %v784
      %v1792 = vadd.f32 %v1760, %v785
      %v1793 = vadd.f32 %v1761, %v786
      %v1794 = vadd.f32 %v1762, %v1667
      %v1795 = vadd.f32 %v1763, %v1669
      %v1796 = vadd.f32 %v1764, %v1671
      %v1797 = vadd.f32 %v1765, %v1673
      %v1798 = vadd.f32 %v1766, %v1675
      %v1799 = vadd.f32 %v1767, %v1677
      %v1800 = vadd.f32 %v1768, %v1679
      %v1801 = vadd.f32 %v1769, %v1681
      %v1802 = vadd.f32 %v1770, %v1683
      %v1803 = vadd.f32 %v1771, %v1685
      %v1804 = vadd.f32 %v1772, %v1687
      %v1805 = vadd.f32 %v1773, %v1689
      %v1806 = vadd.f32 %v1774, %v1691
      %v1807 = vadd.f32 %v1775, %v1693
      %v1808 = vadd.f32 %v1776, %v1695
      %v1809 = vadd.f32 %v1777, %v1697
      %v1810 = vadd.f32 %v1778, %v1699
      %v1811 = vadd.f32 %v1779, %v1701
      %v1812 = vadd.f32 %v1780, %v1703
      %v1813 = vadd.f32 %v1781, %v1705
      %v1814 = vadd.f32 %v1782, %v1707
      %v1815 = vadd.f32 %v1783, %v1709
      %v1816 = vadd.f32 %v1784, %v1711
      %v1817 = vadd.f32 %v1785, %v1713
      %v1818 = vadd.f32 %v1786, %v1715
      %v1819 = vadd.f32 %v1787, %v1717
      %v1820 = vadd.f32 %v1788, %v1719
      %v1821 = vadd.f32 %v1789, %v1721
      %v1822 = vadd.f32 %v1790, %v1723
      %v1823 = vadd.f32 %v1791, %v1725
      %v1824 = vadd.f32 %v1792, %v1727
      %v1825 = vadd.f32 %v1793, %v1729
      %vm1826 = vcmask 7168
      %1827 = vst.msk [vmem:[%s383] sm:$0xff] %vm1826, %v1794
      %1828 = vst.msk [vmem:[%s383 + $0x8] sm:$0xff] %vm1826, %v1795
      %1829 = vst.msk [vmem:[%s383 + $0x10] sm:$0xff] %vm1826, %v1796
      %1830 = vst.msk [vmem:[%s383 + $0x18] sm:$0xff] %vm1826, %v1797
      %1831 = vst.msk [vmem:[%s383 + $0x20] sm:$0xff] %vm1826, %v1798
      %1832 = vst.msk [vmem:[%s383 + $0x28] sm:$0xff] %vm1826, %v1799
      %1833 = vst.msk [vmem:[%s383 + $0x30] sm:$0xff] %vm1826, %v1800
      %1834 = vst.msk [vmem:[%s383 + $0x38] sm:$0xff] %vm1826, %v1801
      %1835 = vst.msk [vmem:[%s383 + $0x40] sm:$0xff] %vm1826, %v1802
      %1836 = vst.msk [vmem:[%s383 + $0x48] sm:$0xff] %vm1826, %v1803
      %1837 = vst.msk [vmem:[%s383 + $0x50] sm:$0xff] %vm1826, %v1804
      %1838 = vst.msk [vmem:[%s383 + $0x58] sm:$0xff] %vm1826, %v1805
      %1839 = vst.msk [vmem:[%s383 + $0x60] sm:$0xff] %vm1826, %v1806
      %1840 = vst.msk [vmem:[%s383 + $0x68] sm:$0xff] %vm1826, %v1807
      %1841 = vst.msk [vmem:[%s383 + $0x70] sm:$0xff] %vm1826, %v1808
      %1842 = vst.msk [vmem:[%s383 + $0x78] sm:$0xff] %vm1826, %v1809
      %1843 = vst.msk [vmem:[%s383 + $0x80] sm:$0xff] %vm1826, %v1810
      %1844 = vst.msk [vmem:[%s383 + $0x88] sm:$0xff] %vm1826, %v1811
      %1845 = vst.msk [vmem:[%s383 + $0x90] sm:$0xff] %vm1826, %v1812
      %1846 = vst.msk [vmem:[%s383 + $0x98] sm:$0xff] %vm1826, %v1813
      %1847 = vst.msk [vmem:[%s383 + $0xa0] sm:$0xff] %vm1826, %v1814
      %1848 = vst.msk [vmem:[%s383 + $0xa8] sm:$0xff] %vm1826, %v1815
      %1849 = vst.msk [vmem:[%s383 + $0xb0] sm:$0xff] %vm1826, %v1816
      %1850 = vst.msk [vmem:[%s383 + $0xb8] sm:$0xff] %vm1826, %v1817
      %1851 = vst.msk [vmem:[%s383 + $0xc0] sm:$0xff] %vm1826, %v1818
      %1852 = vst.msk [vmem:[%s383 + $0xc8] sm:$0xff] %vm1826, %v1819
      %1853 = vst.msk [vmem:[%s383 + $0xd0] sm:$0xff] %vm1826, %v1820
      %1854 = vst.msk [vmem:[%s383 + $0xd8] sm:$0xff] %vm1826, %v1821
      %1855 = vst.msk [vmem:[%s383 + $0xe0] sm:$0xff] %vm1826, %v1822
      %1856 = vst.msk [vmem:[%s383 + $0xe8] sm:$0xff] %vm1826, %v1823
      %1857 = vst.msk [vmem:[%s383 + $0xf0] sm:$0xff] %vm1826, %v1824
      %1858 = vst.msk [vmem:[%s383 + $0xf8] sm:$0xff] %vm1826, %v1825
      %s1859 = smul.u32 32, %s21
      %p1860 = scmp.lt.s32.totalorder %s1859, 63
      %s1861 = scalar_select %p1860, %s1859, 63
      %s1862 = smul.addr %s1861, 8
      %s1863 = scalar_lea.vmem %s10, %s1862
      // Predicated region
      $region61: #{deepfm_forward.1} parent=59 // pred_check
        %p1864 = pneg %p259
      $region62: #{deepfm_forward.1} parent=59 // pred_check_branch
        %1866 = sbr.rel (%p1864) target = $region64
      $region63: #{deepfm_forward.1} parent=59 // pred_region
        %s1867 = smul.u32 32, %s21
      $region64: #{deepfm_forward.1} parent=59 // pred_fallthru
        _
    $region60: #{deepfm_forward.1} parent=5 // pred_fallthru
      _
    %p1868 = scmp.le.s32.totalorder 2, %s16
    // Predicated region
    $region65: #{deepfm_forward.1} parent=5 // pred_check
      %p1869 = pneg %p1868
    $region66: #{deepfm_forward.1} parent=5 // pred_check_branch
      %1871 = sbr.rel (%p1869) target = $region68
    $region67: #{deepfm_forward.1} parent=5 // pred_region
      %s1872 = ssub.s32 %s16, 2
      // Predicated region
      $region69: #{deepfm_forward.1} parent=67 // pred_check
        %p1873 = pneg %p265
      $region70: #{deepfm_forward.1} parent=67 // pred_check_branch
        %1875 = sbr.rel (%p1873) target = $region72
      $region71: #{deepfm_forward.1} parent=67 // pred_region
        %s1876 = smul.u32 32, %s22
        %p1877 = scmp.lt.s32.totalorder %s1876, 63
        %s1878 = scalar_select %p1877, %s1876, 63
        %s1879 = smul.addr %s1878, 8
        %s1880 = scalar_lea.vmem %s10, %s1879
      $region72: #{deepfm_forward.1} parent=67 // pred_fallthru
        _
    $region68: #{deepfm_forward.1} parent=5 // pred_fallthru
      _
  $region6: #{deepfm_forward.1} parent=0 // loop_footer
    %s20 = sadd.s32 1, %s16
  $region7: #{deepfm_forward.1} parent=0 // loop_footer_branch
    %15 = sbr.rel target = $region3
  $region8: #{deepfm_forward.1} parent=0 // loop_exit
    _

</llo_original>
